<compile_context>
chip_gen: v6e
topology: v6e:2x2x1
jax: 0.10.0
libtpu: 0.0.40
codegen_flags: <defaults>
</compile_context>

<pallas_src>
import functools

import jax
import jax.numpy as jnp
from jax.experimental import pallas as pl
from jax.experimental.pallas import tpu as pltpu

EPS = 1e-5


# ----------------------------- fused Pallas kernel -----------------------------------


def _local_bn_relu_kernel(x_ref, w_ref, b_ref, g_ref, beta_ref, o_ref):
    # x_ref:    (col, N, im)     unfolded (+ torch-view-scrambled) patches
    # w_ref:    (col, O_blk, im) local weights for this channel block
    # b_ref:    (1, O_blk, im)   local bias
    # g_ref:    (1, O_blk, 1)    BatchNorm gamma
    # beta_ref: (1, O_blk, 1)    BatchNorm beta
    # o_ref:    (N, O_blk, im)   normalized + ReLU'd output (f32)
    col, n, im = x_ref.shape
    o_blk = w_ref.shape[1]

    # Locally-connected contraction as an accumulating loop over `col`:
    #   acc[n, o, i] += x[j, n, i] * w[j, o, i]
    # No 4-D broadcast product is ever materialized; the accumulator is 4 vregs.
    acc = jnp.zeros((n, o_blk, im), jnp.float32)
    for j in range(col):                       # static trip count -> static slices
        acc = acc + x_ref[j][:, None, :] * w_ref[j][None, :, :]

    y = acc + b_ref[...]                       # bias (1, O_blk, im), broadcast over N

    # Train-mode BatchNorm over (N, im) per channel (biased variance, torch semantics).
    # Block-local statistics are exact because every channel block sees the FULL
    # (N, im) extent -- do not tile N or im without adding a cross-block reduction.
    inv_cnt = 1.0 / float(n * im)
    mean = jnp.sum(jnp.sum(y, axis=2, keepdims=True), axis=0, keepdims=True) * inv_cnt
    yc = y - mean                                                      # (N, O_blk, im)
    var = jnp.sum(jnp.sum(yc * yc, axis=2, keepdims=True), axis=0, keepdims=True) * inv_cnt
    scale = g_ref[...] * jax.lax.rsqrt(var + EPS)                      # (1, O_blk, 1)

    o_ref[...] = jnp.maximum(yc * scale + beta_ref[...], 0.0)


# ------------------------------- JAX glue ---------------------------------------------


def _unfold_scrambled(x, kernel_size, stride):
    """Replicates F.unfold followed by the reference's .view(N, 1, im, col).

    Returns xr of shape (N, im, col) where xr is the *memory reinterpretation* of the
    contiguous unfold output (N, col, im), exactly as the PyTorch code does.
    """
    N, C, H, W = x.shape
    k, s = kernel_size, stride
    p = k // 2
    fold = (H + 2 * p - k) // s + 1
    im, col = fold * fold, k * k * C

    xp = jnp.pad(x, ((0, 0), (0, 0), (p, p), (p, p)))
    taps = []
    for kh in range(k):
        for kw in range(k):
            taps.append(xp[:, :, kh : kh + s * fold : s, kw : kw + s * fold : s])
    U = jnp.stack(taps, axis=2)            # (N, C, k*k, fold, fold)
    U = U.reshape(N, col, im)              # == torch unfold output (N, C*k*k, L)
    xr = U.reshape(N, im, col)             # torch's .view scramble (no transpose!)
    return xr, fold, im, col


def _num_tensorcores():
    """Best-effort detection of dual-TensorCore chips (v7x); single-TC otherwise."""
    try:
        kind = jax.devices()[0].device_kind.lower()
    except Exception:
        return 1
    return 2 if "v7" in kind else 1


def _pick_channel_block(O, N, col, im, n_tensorcores):
    """Choose the output-channel block size.

    Single grid step (o_blk = O) when everything fits a conservative VMEM budget --
    on single-TensorCore chips (v5e/v6e) the grid is a serial loop, so extra steps are
    pure per-step overhead.  Otherwise (or when >1 TensorCore is available and O allows
    it) use the largest multiple-of-8 divisor of O that fits, keeping output tiles
    (8,128)-clean so channel blocks can be sharded across cores with "parallel".
    """
    budget = 24 << 20                       # headroom under v7x's 64 MiB physical VMEM

    def fits(ob):
        n_pad = max(N, 8)                   # sublane padding of the shared x block
        # double-buffered pipeline copies of each operand, f32
        return 4 * 2 * (col * ob * im + col * n_pad * im + ob * im + N * ob * im) <= budget

    divisors = [d for d in range(8, O, 8) if O % d == 0]
    cands = [O] + sorted(divisors, reverse=True)
    fitting = [c for c in cands if fits(c)] or [cands[-1]]
    if n_tensorcores > 1:
        multi = [c for c in fitting if O // c >= n_tensorcores]
        if multi:
            return multi[0]
    return fitting[0]


def prepare_params(weight, bias, gamma, beta, *, kernel_size, stride, image_size):
    """One-time re-layout of the static parameters into the kernel layout.

    Hoisted out of the per-call path so the weight transpose (the largest operand) is
    not repeated on every forward call.
    """
    O = weight.shape[0]
    c_in = weight.shape[3]
    pad = kernel_size // 2
    fold = (image_size + 2 * pad - kernel_size) // stride + 1
    im, col = fold * fold, kernel_size * kernel_size * c_in

    # torch does weight.view(O, im, col): a contiguous row-major reinterpretation.
    w_k = jnp.transpose(weight.astype(jnp.float32).reshape(O, im, col), (2, 0, 1))  # (col,O,im)
    b_k = bias.astype(jnp.float32).reshape(1, O, im)
    g_k = gamma.astype(jnp.float32).reshape(1, O, 1)
    bt_k = beta.astype(jnp.float32).reshape(1, O, 1)
    return w_k, b_k, g_k, bt_k


def ll_custom_forward(x, w_k, b_k, g_k, bt_k, *, kernel_size, stride):
    """LL_custom.forward: LocalLinear_custom -> BatchNorm2d(train) -> f16 -> ReLU."""
    x = x.astype(jnp.float32)
    N = x.shape[0]
    col, O, im = w_k.shape

    xr, fold, _, _ = _unfold_scrambled(x, kernel_size, stride)
    x_k = jnp.transpose(xr, (2, 0, 1))                       # (col, N, im)

    o_blk = _pick_channel_block(O, N, col, im, _num_tensorcores())
    grid = (O // o_blk,)

    # TODO(synk): for configurations with large col (= k^2 * C_in), add a second
    #             "arbitrary" grid axis over col with a VMEM accumulator scratch; not
    #             needed at these sizes (col=36 fits trivially).
    y = pl.pallas_call(
        _local_bn_relu_kernel,
        out_shape=jax.ShapeDtypeStruct((N, O, im), jnp.float32),
        grid=grid,
        in_specs=[
            pl.BlockSpec((col, N, im), lambda i: (0, 0, 0)),      # patches (shared)
            pl.BlockSpec((col, o_blk, im), lambda i: (0, i, 0)),  # weights
            pl.BlockSpec((1, o_blk, im), lambda i: (0, i, 0)),    # bias
            pl.BlockSpec((1, o_blk, 1), lambda i: (0, i, 0)),     # gamma
            pl.BlockSpec((1, o_blk, 1), lambda i: (0, i, 0)),     # beta
        ],
        out_specs=pl.BlockSpec((N, o_blk, im), lambda i: (0, i, 0)),
        compiler_params=pltpu.CompilerParams(
            dimension_semantics=("parallel",),
            vmem_limit_bytes=32 * 1024 * 1024,
        ),
    )(x_k, w_k, b_k, g_k, bt_k)

    # Output is already (N, O, im): no post-kernel transpose, only a free reshape.
    # The tofloat32 wrapper casts to float16 before ReLU; relu/cast commute, so casting
    # here matches the reference.
    return y.reshape(N, O, fold, fold).astype(jnp.float16)


# --------------------------- pure-JAX reference (for validation) ----------------------


def _reference_forward(x, weight, bias, gamma, beta, *, kernel_size, stride):
    x = x.astype(jnp.float32)
    N = x.shape[0]
    O = weight.shape[0]
    xr, fold, im, col = _unfold_scrambled(x, kernel_size, stride)
    w_flat = weight.astype(jnp.float32).reshape(O, im, col)
    y = jnp.sum(xr[:, None, :, :] * w_flat[None, :, :, :], axis=-1)       # (N, O, im)
    y = y + bias.astype(jnp.float32).reshape(O, im)[None]
    mean = jnp.mean(y, axis=(0, 2), keepdims=True)
    var = jnp.mean((y - mean) ** 2, axis=(0, 2), keepdims=True)
    ybn = (y - mean) * jax.lax.rsqrt(var + EPS)
    ybn = ybn * gamma.astype(jnp.float32).reshape(1, O, 1) + beta.astype(
        jnp.float32
    ).reshape(1, O, 1)
    out = jnp.maximum(ybn.astype(jnp.float16), jnp.float16(0.0))  # cast then ReLU (torch order)
    return out.reshape(N, O, fold, fold)


# ------------------------------------ main --------------------------------------------

if __name__ == "__main__":
    key = jax.random.PRNGKey(0)
    kx, kw, kb = jax.random.split(key, 3)

    # LL_custom(size_in=4, size_out=8, kernel_size=3, stride=1, image_size=16)
    N, C_IN, IMG = 2, 4, 16
    C_OUT, K, STRIDE = 8, 3, 1
    PAD = K // 2
    FOLD = (IMG + 2 * PAD - K) // STRIDE + 1

    x = jax.random.normal(kx, (N, C_IN, IMG, IMG), jnp.float32)                   # NCHW
    weight = jax.random.normal(kw, (C_OUT, FOLD, FOLD, C_IN, K, K), jnp.float32)  # randn init
    bias = jax.random.normal(kb, (C_OUT, FOLD, FOLD), jnp.float32)                # randn init
    gamma = jnp.ones((C_OUT,), jnp.float32)   # fresh nn.BatchNorm2d affine init
    beta = jnp.zeros((C_OUT,), jnp.float32)

    # Static parameters re-laid out once, outside the per-call path.
    params = prepare_params(weight, bias, gamma, beta,
                            kernel_size=K, stride=STRIDE, image_size=IMG)

    fwd = jax.jit(functools.partial(ll_custom_forward, kernel_size=K, stride=STRIDE))
    out = jax.block_until_ready(fwd(x, *params))

    assert out.shape == (N, C_OUT, FOLD, FOLD) and out.dtype == jnp.float16

    ref = _reference_forward(x, weight, bias, gamma, beta, kernel_size=K, stride=STRIDE)
    max_err = float(
        jnp.max(jnp.abs(out.astype(jnp.float32) - ref.astype(jnp.float32)))
    )
    assert max_err < 1e-2, f"max abs err vs reference: {max_err}"

    print("KERNEL_OK")
</pallas_src>

<mosaic_0001>
module attributes {stable_mosaic.version = 11 : i64} {
  func.func @_local_bn_relu_kernel(%arg0: i32, %arg1: memref<36x2x256xf32, #tpu.memory_space<vmem>>, %arg2: memref<36x8x256xf32, #tpu.memory_space<vmem>>, %arg3: memref<1x8x256xf32, #tpu.memory_space<vmem>>, %arg4: memref<1x8x1xf32, #tpu.memory_space<vmem>>, %arg5: memref<1x8x1xf32, #tpu.memory_space<vmem>>, %arg6: memref<2x8x256xf32, #tpu.memory_space<vmem>>) attributes {dimension_semantics = [#tpu.dimension_semantics<parallel>], iteration_bounds = array<i64: 1>, scalar_prefetch = 0 : i64, scratch_operands = 0 : i64, tpu.core_type = #tpu.core_type<tc>, window_params = [{pipeline_mode = #tpu.pipeline_mode<synchronous>, transform_indices = @transform_0, window_bounds = array<i64: 36, 2, 256>}, {transform_indices = @transform_1, window_bounds = array<i64: 36, 8, 256>}, {transform_indices = @transform_2, window_bounds = array<i64: 1, 8, 256>}, {transform_indices = @transform_3, window_bounds = array<i64: 1, 8, 1>}, {transform_indices = @transform_4, window_bounds = array<i64: 1, 8, 1>}, {transform_indices = @transform_5, window_bounds = array<i64: 2, 8, 256>}]} {
    %cst = arith.constant 0.000000e+00 : f32
    %0 = vector.broadcast %cst : f32 to vector<2x8x256xf32>
    %c0 = arith.constant 0 : index
    %c0_0 = arith.constant 0 : index
    %c0_1 = arith.constant 0 : index
    %1 = vector.load %arg1[%c0, %c0_0, %c0_1] : memref<36x2x256xf32, #tpu.memory_space<vmem>>, vector<1x2x256xf32>
    %2 = vector.shape_cast %1 : vector<1x2x256xf32> to vector<2x256xf32>
    %3 = vector.shape_cast %2 : vector<2x256xf32> to vector<2x1x256xf32>
    %c0_2 = arith.constant 0 : index
    %c0_3 = arith.constant 0 : index
    %c0_4 = arith.constant 0 : index
    %4 = vector.load %arg2[%c0_2, %c0_3, %c0_4] : memref<36x8x256xf32, #tpu.memory_space<vmem>>, vector<1x8x256xf32>
    %5 = vector.shape_cast %4 : vector<1x8x256xf32> to vector<8x256xf32>
    %6 = vector.shape_cast %5 : vector<8x256xf32> to vector<1x8x256xf32>
    %7 = vector.broadcast %3 : vector<2x1x256xf32> to vector<2x8x256xf32>
    %8 = vector.broadcast %6 : vector<1x8x256xf32> to vector<2x8x256xf32>
    %9 = arith.mulf %7, %8 : vector<2x8x256xf32>
    %10 = arith.addf %0, %9 : vector<2x8x256xf32>
    %c1 = arith.constant 1 : index
    %c0_5 = arith.constant 0 : index
    %c0_6 = arith.constant 0 : index
    %11 = vector.load %arg1[%c1, %c0_5, %c0_6] : memref<36x2x256xf32, #tpu.memory_space<vmem>>, vector<1x2x256xf32>
    %12 = vector.shape_cast %11 : vector<1x2x256xf32> to vector<2x256xf32>
    %13 = vector.shape_cast %12 : vector<2x256xf32> to vector<2x1x256xf32>
    %c1_7 = arith.constant 1 : index
    %c0_8 = arith.constant 0 : index
    %c0_9 = arith.constant 0 : index
    %14 = vector.load %arg2[%c1_7, %c0_8, %c0_9] : memref<36x8x256xf32, #tpu.memory_space<vmem>>, vector<1x8x256xf32>
    %15 = vector.shape_cast %14 : vector<1x8x256xf32> to vector<8x256xf32>
    %16 = vector.shape_cast %15 : vector<8x256xf32> to vector<1x8x256xf32>
    %17 = vector.broadcast %13 : vector<2x1x256xf32> to vector<2x8x256xf32>
    %18 = vector.broadcast %16 : vector<1x8x256xf32> to vector<2x8x256xf32>
    %19 = arith.mulf %17, %18 : vector<2x8x256xf32>
    %20 = arith.addf %10, %19 : vector<2x8x256xf32>
    %c2 = arith.constant 2 : index
    %c0_10 = arith.constant 0 : index
    %c0_11 = arith.constant 0 : index
    %21 = vector.load %arg1[%c2, %c0_10, %c0_11] : memref<36x2x256xf32, #tpu.memory_space<vmem>>, vector<1x2x256xf32>
    %22 = vector.shape_cast %21 : vector<1x2x256xf32> to vector<2x256xf32>
    %23 = vector.shape_cast %22 : vector<2x256xf32> to vector<2x1x256xf32>
    %c2_12 = arith.constant 2 : index
    %c0_13 = arith.constant 0 : index
    %c0_14 = arith.constant 0 : index
    %24 = vector.load %arg2[%c2_12, %c0_13, %c0_14] : memref<36x8x256xf32, #tpu.memory_space<vmem>>, vector<1x8x256xf32>
    %25 = vector.shape_cast %24 : vector<1x8x256xf32> to vector<8x256xf32>
    %26 = vector.shape_cast %25 : vector<8x256xf32> to vector<1x8x256xf32>
    %27 = vector.broadcast %23 : vector<2x1x256xf32> to vector<2x8x256xf32>
    %28 = vector.broadcast %26 : vector<1x8x256xf32> to vector<2x8x256xf32>
    %29 = arith.mulf %27, %28 : vector<2x8x256xf32>
    %30 = arith.addf %20, %29 : vector<2x8x256xf32>
    %c3 = arith.constant 3 : index
    %c0_15 = arith.constant 0 : index
    %c0_16 = arith.constant 0 : index
    %31 = vector.load %arg1[%c3, %c0_15, %c0_16] : memref<36x2x256xf32, #tpu.memory_space<vmem>>, vector<1x2x256xf32>
    %32 = vector.shape_cast %31 : vector<1x2x256xf32> to vector<2x256xf32>
    %33 = vector.shape_cast %32 : vector<2x256xf32> to vector<2x1x256xf32>
    %c3_17 = arith.constant 3 : index
    %c0_18 = arith.constant 0 : index
    %c0_19 = arith.constant 0 : index
    %34 = vector.load %arg2[%c3_17, %c0_18, %c0_19] : memref<36x8x256xf32, #tpu.memory_space<vmem>>, vector<1x8x256xf32>
    %35 = vector.shape_cast %34 : vector<1x8x256xf32> to vector<8x256xf32>
    %36 = vector.shape_cast %35 : vector<8x256xf32> to vector<1x8x256xf32>
    %37 = vector.broadcast %33 : vector<2x1x256xf32> to vector<2x8x256xf32>
    %38 = vector.broadcast %36 : vector<1x8x256xf32> to vector<2x8x256xf32>
    %39 = arith.mulf %37, %38 : vector<2x8x256xf32>
    %40 = arith.addf %30, %39 : vector<2x8x256xf32>
    %c4 = arith.constant 4 : index
    %c0_20 = arith.constant 0 : index
    %c0_21 = arith.constant 0 : index
    %41 = vector.load %arg1[%c4, %c0_20, %c0_21] : memref<36x2x256xf32, #tpu.memory_space<vmem>>, vector<1x2x256xf32>
    %42 = vector.shape_cast %41 : vector<1x2x256xf32> to vector<2x256xf32>
    %43 = vector.shape_cast %42 : vector<2x256xf32> to vector<2x1x256xf32>
    %c4_22 = arith.constant 4 : index
    %c0_23 = arith.constant 0 : index
    %c0_24 = arith.constant 0 : index
    %44 = vector.load %arg2[%c4_22, %c0_23, %c0_24] : memref<36x8x256xf32, #tpu.memory_space<vmem>>, vector<1x8x256xf32>
    %45 = vector.shape_cast %44 : vector<1x8x256xf32> to vector<8x256xf32>
    %46 = vector.shape_cast %45 : vector<8x256xf32> to vector<1x8x256xf32>
    %47 = vector.broadcast %43 : vector<2x1x256xf32> to vector<2x8x256xf32>
    %48 = vector.broadcast %46 : vector<1x8x256xf32> to vector<2x8x256xf32>
    %49 = arith.mulf %47, %48 : vector<2x8x256xf32>
    %50 = arith.addf %40, %49 : vector<2x8x256xf32>
    %c5 = arith.constant 5 : index
    %c0_25 = arith.constant 0 : index
    %c0_26 = arith.constant 0 : index
    %51 = vector.load %arg1[%c5, %c0_25, %c0_26] : memref<36x2x256xf32, #tpu.memory_space<vmem>>, vector<1x2x256xf32>
    %52 = vector.shape_cast %51 : vector<1x2x256xf32> to vector<2x256xf32>
    %53 = vector.shape_cast %52 : vector<2x256xf32> to vector<2x1x256xf32>
    %c5_27 = arith.constant 5 : index
    %c0_28 = arith.constant 0 : index
    %c0_29 = arith.constant 0 : index
    %54 = vector.load %arg2[%c5_27, %c0_28, %c0_29] : memref<36x8x256xf32, #tpu.memory_space<vmem>>, vector<1x8x256xf32>
    %55 = vector.shape_cast %54 : vector<1x8x256xf32> to vector<8x256xf32>
    %56 = vector.shape_cast %55 : vector<8x256xf32> to vector<1x8x256xf32>
    %57 = vector.broadcast %53 : vector<2x1x256xf32> to vector<2x8x256xf32>
    %58 = vector.broadcast %56 : vector<1x8x256xf32> to vector<2x8x256xf32>
    %59 = arith.mulf %57, %58 : vector<2x8x256xf32>
    %60 = arith.addf %50, %59 : vector<2x8x256xf32>
    %c6 = arith.constant 6 : index
    %c0_30 = arith.constant 0 : index
    %c0_31 = arith.constant 0 : index
    %61 = vector.load %arg1[%c6, %c0_30, %c0_31] : memref<36x2x256xf32, #tpu.memory_space<vmem>>, vector<1x2x256xf32>
    %62 = vector.shape_cast %61 : vector<1x2x256xf32> to vector<2x256xf32>
    %63 = vector.shape_cast %62 : vector<2x256xf32> to vector<2x1x256xf32>
    %c6_32 = arith.constant 6 : index
    %c0_33 = arith.constant 0 : index
    %c0_34 = arith.constant 0 : index
    %64 = vector.load %arg2[%c6_32, %c0_33, %c0_34] : memref<36x8x256xf32, #tpu.memory_space<vmem>>, vector<1x8x256xf32>
    %65 = vector.shape_cast %64 : vector<1x8x256xf32> to vector<8x256xf32>
    %66 = vector.shape_cast %65 : vector<8x256xf32> to vector<1x8x256xf32>
    %67 = vector.broadcast %63 : vector<2x1x256xf32> to vector<2x8x256xf32>
    %68 = vector.broadcast %66 : vector<1x8x256xf32> to vector<2x8x256xf32>
    %69 = arith.mulf %67, %68 : vector<2x8x256xf32>
    %70 = arith.addf %60, %69 : vector<2x8x256xf32>
    %c7 = arith.constant 7 : index
    %c0_35 = arith.constant 0 : index
    %c0_36 = arith.constant 0 : index
    %71 = vector.load %arg1[%c7, %c0_35, %c0_36] : memref<36x2x256xf32, #tpu.memory_space<vmem>>, vector<1x2x256xf32>
    %72 = vector.shape_cast %71 : vector<1x2x256xf32> to vector<2x256xf32>
    %73 = vector.shape_cast %72 : vector<2x256xf32> to vector<2x1x256xf32>
    %c7_37 = arith.constant 7 : index
    %c0_38 = arith.constant 0 : index
    %c0_39 = arith.constant 0 : index
    %74 = vector.load %arg2[%c7_37, %c0_38, %c0_39] : memref<36x8x256xf32, #tpu.memory_space<vmem>>, vector<1x8x256xf32>
    %75 = vector.shape_cast %74 : vector<1x8x256xf32> to vector<8x256xf32>
    %76 = vector.shape_cast %75 : vector<8x256xf32> to vector<1x8x256xf32>
    %77 = vector.broadcast %73 : vector<2x1x256xf32> to vector<2x8x256xf32>
    %78 = vector.broadcast %76 : vector<1x8x256xf32> to vector<2x8x256xf32>
    %79 = arith.mulf %77, %78 : vector<2x8x256xf32>
    %80 = arith.addf %70, %79 : vector<2x8x256xf32>
    %c8 = arith.constant 8 : index
    %c0_40 = arith.constant 0 : index
    %c0_41 = arith.constant 0 : index
    %81 = vector.load %arg1[%c8, %c0_40, %c0_41] : memref<36x2x256xf32, #tpu.memory_space<vmem>>, vector<1x2x256xf32>
    %82 = vector.shape_cast %81 : vector<1x2x256xf32> to vector<2x256xf32>
    %83 = vector.shape_cast %82 : vector<2x256xf32> to vector<2x1x256xf32>
    %c8_42 = arith.constant 8 : index
    %c0_43 = arith.constant 0 : index
    %c0_44 = arith.constant 0 : index
    %84 = vector.load %arg2[%c8_42, %c0_43, %c0_44] : memref<36x8x256xf32, #tpu.memory_space<vmem>>, vector<1x8x256xf32>
    %85 = vector.shape_cast %84 : vector<1x8x256xf32> to vector<8x256xf32>
    %86 = vector.shape_cast %85 : vector<8x256xf32> to vector<1x8x256xf32>
    %87 = vector.broadcast %83 : vector<2x1x256xf32> to vector<2x8x256xf32>
    %88 = vector.broadcast %86 : vector<1x8x256xf32> to vector<2x8x256xf32>
    %89 = arith.mulf %87, %88 : vector<2x8x256xf32>
    %90 = arith.addf %80, %89 : vector<2x8x256xf32>
    %c9 = arith.constant 9 : index
    %c0_45 = arith.constant 0 : index
    %c0_46 = arith.constant 0 : index
    %91 = vector.load %arg1[%c9, %c0_45, %c0_46] : memref<36x2x256xf32, #tpu.memory_space<vmem>>, vector<1x2x256xf32>
    %92 = vector.shape_cast %91 : vector<1x2x256xf32> to vector<2x256xf32>
    %93 = vector.shape_cast %92 : vector<2x256xf32> to vector<2x1x256xf32>
    %c9_47 = arith.constant 9 : index
    %c0_48 = arith.constant 0 : index
    %c0_49 = arith.constant 0 : index
    %94 = vector.load %arg2[%c9_47, %c0_48, %c0_49] : memref<36x8x256xf32, #tpu.memory_space<vmem>>, vector<1x8x256xf32>
    %95 = vector.shape_cast %94 : vector<1x8x256xf32> to vector<8x256xf32>
    %96 = vector.shape_cast %95 : vector<8x256xf32> to vector<1x8x256xf32>
    %97 = vector.broadcast %93 : vector<2x1x256xf32> to vector<2x8x256xf32>
    %98 = vector.broadcast %96 : vector<1x8x256xf32> to vector<2x8x256xf32>
    %99 = arith.mulf %97, %98 : vector<2x8x256xf32>
    %100 = arith.addf %90, %99 : vector<2x8x256xf32>
    %c10 = arith.constant 10 : index
    %c0_50 = arith.constant 0 : index
    %c0_51 = arith.constant 0 : index
    %101 = vector.load %arg1[%c10, %c0_50, %c0_51] : memref<36x2x256xf32, #tpu.memory_space<vmem>>, vector<1x2x256xf32>
    %102 = vector.shape_cast %101 : vector<1x2x256xf32> to vector<2x256xf32>
    %103 = vector.shape_cast %102 : vector<2x256xf32> to vector<2x1x256xf32>
    %c10_52 = arith.constant 10 : index
    %c0_53 = arith.constant 0 : index
    %c0_54 = arith.constant 0 : index
    %104 = vector.load %arg2[%c10_52, %c0_53, %c0_54] : memref<36x8x256xf32, #tpu.memory_space<vmem>>, vector<1x8x256xf32>
    %105 = vector.shape_cast %104 : vector<1x8x256xf32> to vector<8x256xf32>
    %106 = vector.shape_cast %105 : vector<8x256xf32> to vector<1x8x256xf32>
    %107 = vector.broadcast %103 : vector<2x1x256xf32> to vector<2x8x256xf32>
    %108 = vector.broadcast %106 : vector<1x8x256xf32> to vector<2x8x256xf32>
    %109 = arith.mulf %107, %108 : vector<2x8x256xf32>
    %110 = arith.addf %100, %109 : vector<2x8x256xf32>
    %c11 = arith.constant 11 : index
    %c0_55 = arith.constant 0 : index
    %c0_56 = arith.constant 0 : index
    %111 = vector.load %arg1[%c11, %c0_55, %c0_56] : memref<36x2x256xf32, #tpu.memory_space<vmem>>, vector<1x2x256xf32>
    %112 = vector.shape_cast %111 : vector<1x2x256xf32> to vector<2x256xf32>
    %113 = vector.shape_cast %112 : vector<2x256xf32> to vector<2x1x256xf32>
    %c11_57 = arith.constant 11 : index
    %c0_58 = arith.constant 0 : index
    %c0_59 = arith.constant 0 : index
    %114 = vector.load %arg2[%c11_57, %c0_58, %c0_59] : memref<36x8x256xf32, #tpu.memory_space<vmem>>, vector<1x8x256xf32>
    %115 = vector.shape_cast %114 : vector<1x8x256xf32> to vector<8x256xf32>
    %116 = vector.shape_cast %115 : vector<8x256xf32> to vector<1x8x256xf32>
    %117 = vector.broadcast %113 : vector<2x1x256xf32> to vector<2x8x256xf32>
    %118 = vector.broadcast %116 : vector<1x8x256xf32> to vector<2x8x256xf32>
    %119 = arith.mulf %117, %118 : vector<2x8x256xf32>
    %120 = arith.addf %110, %119 : vector<2x8x256xf32>
    %c12 = arith.constant 12 : index
    %c0_60 = arith.constant 0 : index
    %c0_61 = arith.constant 0 : index
    %121 = vector.load %arg1[%c12, %c0_60, %c0_61] : memref<36x2x256xf32, #tpu.memory_space<vmem>>, vector<1x2x256xf32>
    %122 = vector.shape_cast %121 : vector<1x2x256xf32> to vector<2x256xf32>
    %123 = vector.shape_cast %122 : vector<2x256xf32> to vector<2x1x256xf32>
    %c12_62 = arith.constant 12 : index
    %c0_63 = arith.constant 0 : index
    %c0_64 = arith.constant 0 : index
    %124 = vector.load %arg2[%c12_62, %c0_63, %c0_64] : memref<36x8x256xf32, #tpu.memory_space<vmem>>, vector<1x8x256xf32>
    %125 = vector.shape_cast %124 : vector<1x8x256xf32> to vector<8x256xf32>
    %126 = vector.shape_cast %125 : vector<8x256xf32> to vector<1x8x256xf32>
    %127 = vector.broadcast %123 : vector<2x1x256xf32> to vector<2x8x256xf32>
    %128 = vector.broadcast %126 : vector<1x8x256xf32> to vector<2x8x256xf32>
    %129 = arith.mulf %127, %128 : vector<2x8x256xf32>
    %130 = arith.addf %120, %129 : vector<2x8x256xf32>
    %c13 = arith.constant 13 : index
    %c0_65 = arith.constant 0 : index
    %c0_66 = arith.constant 0 : index
    %131 = vector.load %arg1[%c13, %c0_65, %c0_66] : memref<36x2x256xf32, #tpu.memory_space<vmem>>, vector<1x2x256xf32>
    %132 = vector.shape_cast %131 : vector<1x2x256xf32> to vector<2x256xf32>
    %133 = vector.shape_cast %132 : vector<2x256xf32> to vector<2x1x256xf32>
    %c13_67 = arith.constant 13 : index
    %c0_68 = arith.constant 0 : index
    %c0_69 = arith.constant 0 : index
    %134 = vector.load %arg2[%c13_67, %c0_68, %c0_69] : memref<36x8x256xf32, #tpu.memory_space<vmem>>, vector<1x8x256xf32>
    %135 = vector.shape_cast %134 : vector<1x8x256xf32> to vector<8x256xf32>
    %136 = vector.shape_cast %135 : vector<8x256xf32> to vector<1x8x256xf32>
    %137 = vector.broadcast %133 : vector<2x1x256xf32> to vector<2x8x256xf32>
    %138 = vector.broadcast %136 : vector<1x8x256xf32> to vector<2x8x256xf32>
    %139 = arith.mulf %137, %138 : vector<2x8x256xf32>
    %140 = arith.addf %130, %139 : vector<2x8x256xf32>
    %c14 = arith.constant 14 : index
    %c0_70 = arith.constant 0 : index
    %c0_71 = arith.constant 0 : index
    %141 = vector.load %arg1[%c14, %c0_70, %c0_71] : memref<36x2x256xf32, #tpu.memory_space<vmem>>, vector<1x2x256xf32>
    %142 = vector.shape_cast %141 : vector<1x2x256xf32> to vector<2x256xf32>
    %143 = vector.shape_cast %142 : vector<2x256xf32> to vector<2x1x256xf32>
    %c14_72 = arith.constant 14 : index
    %c0_73 = arith.constant 0 : index
    %c0_74 = arith.constant 0 : index
    %144 = vector.load %arg2[%c14_72, %c0_73, %c0_74] : memref<36x8x256xf32, #tpu.memory_space<vmem>>, vector<1x8x256xf32>
    %145 = vector.shape_cast %144 : vector<1x8x256xf32> to vector<8x256xf32>
    %146 = vector.shape_cast %145 : vector<8x256xf32> to vector<1x8x256xf32>
    %147 = vector.broadcast %143 : vector<2x1x256xf32> to vector<2x8x256xf32>
    %148 = vector.broadcast %146 : vector<1x8x256xf32> to vector<2x8x256xf32>
    %149 = arith.mulf %147, %148 : vector<2x8x256xf32>
    %150 = arith.addf %140, %149 : vector<2x8x256xf32>
    %c15 = arith.constant 15 : index
    %c0_75 = arith.constant 0 : index
    %c0_76 = arith.constant 0 : index
    %151 = vector.load %arg1[%c15, %c0_75, %c0_76] : memref<36x2x256xf32, #tpu.memory_space<vmem>>, vector<1x2x256xf32>
    %152 = vector.shape_cast %151 : vector<1x2x256xf32> to vector<2x256xf32>
    %153 = vector.shape_cast %152 : vector<2x256xf32> to vector<2x1x256xf32>
    %c15_77 = arith.constant 15 : index
    %c0_78 = arith.constant 0 : index
    %c0_79 = arith.constant 0 : index
    %154 = vector.load %arg2[%c15_77, %c0_78, %c0_79] : memref<36x8x256xf32, #tpu.memory_space<vmem>>, vector<1x8x256xf32>
    %155 = vector.shape_cast %154 : vector<1x8x256xf32> to vector<8x256xf32>
    %156 = vector.shape_cast %155 : vector<8x256xf32> to vector<1x8x256xf32>
    %157 = vector.broadcast %153 : vector<2x1x256xf32> to vector<2x8x256xf32>
    %158 = vector.broadcast %156 : vector<1x8x256xf32> to vector<2x8x256xf32>
    %159 = arith.mulf %157, %158 : vector<2x8x256xf32>
    %160 = arith.addf %150, %159 : vector<2x8x256xf32>
    %c16 = arith.constant 16 : index
    %c0_80 = arith.constant 0 : index
    %c0_81 = arith.constant 0 : index
    %161 = vector.load %arg1[%c16, %c0_80, %c0_81] : memref<36x2x256xf32, #tpu.memory_space<vmem>>, vector<1x2x256xf32>
    %162 = vector.shape_cast %161 : vector<1x2x256xf32> to vector<2x256xf32>
    %163 = vector.shape_cast %162 : vector<2x256xf32> to vector<2x1x256xf32>
    %c16_82 = arith.constant 16 : index
    %c0_83 = arith.constant 0 : index
    %c0_84 = arith.constant 0 : index
    %164 = vector.load %arg2[%c16_82, %c0_83, %c0_84] : memref<36x8x256xf32, #tpu.memory_space<vmem>>, vector<1x8x256xf32>
    %165 = vector.shape_cast %164 : vector<1x8x256xf32> to vector<8x256xf32>
    %166 = vector.shape_cast %165 : vector<8x256xf32> to vector<1x8x256xf32>
    %167 = vector.broadcast %163 : vector<2x1x256xf32> to vector<2x8x256xf32>
    %168 = vector.broadcast %166 : vector<1x8x256xf32> to vector<2x8x256xf32>
    %169 = arith.mulf %167, %168 : vector<2x8x256xf32>
    %170 = arith.addf %160, %169 : vector<2x8x256xf32>
    %c17 = arith.constant 17 : index
    %c0_85 = arith.constant 0 : index
    %c0_86 = arith.constant 0 : index
    %171 = vector.load %arg1[%c17, %c0_85, %c0_86] : memref<36x2x256xf32, #tpu.memory_space<vmem>>, vector<1x2x256xf32>
    %172 = vector.shape_cast %171 : vector<1x2x256xf32> to vector<2x256xf32>
    %173 = vector.shape_cast %172 : vector<2x256xf32> to vector<2x1x256xf32>
    %c17_87 = arith.constant 17 : index
    %c0_88 = arith.constant 0 : index
    %c0_89 = arith.constant 0 : index
    %174 = vector.load %arg2[%c17_87, %c0_88, %c0_89] : memref<36x8x256xf32, #tpu.memory_space<vmem>>, vector<1x8x256xf32>
    %175 = vector.shape_cast %174 : vector<1x8x256xf32> to vector<8x256xf32>
    %176 = vector.shape_cast %175 : vector<8x256xf32> to vector<1x8x256xf32>
    %177 = vector.broadcast %173 : vector<2x1x256xf32> to vector<2x8x256xf32>
    %178 = vector.broadcast %176 : vector<1x8x256xf32> to vector<2x8x256xf32>
    %179 = arith.mulf %177, %178 : vector<2x8x256xf32>
    %180 = arith.addf %170, %179 : vector<2x8x256xf32>
    %c18 = arith.constant 18 : index
    %c0_90 = arith.constant 0 : index
    %c0_91 = arith.constant 0 : index
    %181 = vector.load %arg1[%c18, %c0_90, %c0_91] : memref<36x2x256xf32, #tpu.memory_space<vmem>>, vector<1x2x256xf32>
    %182 = vector.shape_cast %181 : vector<1x2x256xf32> to vector<2x256xf32>
    %183 = vector.shape_cast %182 : vector<2x256xf32> to vector<2x1x256xf32>
    %c18_92 = arith.constant 18 : index
    %c0_93 = arith.constant 0 : index
    %c0_94 = arith.constant 0 : index
    %184 = vector.load %arg2[%c18_92, %c0_93, %c0_94] : memref<36x8x256xf32, #tpu.memory_space<vmem>>, vector<1x8x256xf32>
    %185 = vector.shape_cast %184 : vector<1x8x256xf32> to vector<8x256xf32>
    %186 = vector.shape_cast %185 : vector<8x256xf32> to vector<1x8x256xf32>
    %187 = vector.broadcast %183 : vector<2x1x256xf32> to vector<2x8x256xf32>
    %188 = vector.broadcast %186 : vector<1x8x256xf32> to vector<2x8x256xf32>
    %189 = arith.mulf %187, %188 : vector<2x8x256xf32>
    %190 = arith.addf %180, %189 : vector<2x8x256xf32>
    %c19 = arith.constant 19 : index
    %c0_95 = arith.constant 0 : index
    %c0_96 = arith.constant 0 : index
    %191 = vector.load %arg1[%c19, %c0_95, %c0_96] : memref<36x2x256xf32, #tpu.memory_space<vmem>>, vector<1x2x256xf32>
    %192 = vector.shape_cast %191 : vector<1x2x256xf32> to vector<2x256xf32>
    %193 = vector.shape_cast %192 : vector<2x256xf32> to vector<2x1x256xf32>
    %c19_97 = arith.constant 19 : index
    %c0_98 = arith.constant 0 : index
    %c0_99 = arith.constant 0 : index
    %194 = vector.load %arg2[%c19_97, %c0_98, %c0_99] : memref<36x8x256xf32, #tpu.memory_space<vmem>>, vector<1x8x256xf32>
    %195 = vector.shape_cast %194 : vector<1x8x256xf32> to vector<8x256xf32>
    %196 = vector.shape_cast %195 : vector<8x256xf32> to vector<1x8x256xf32>
    %197 = vector.broadcast %193 : vector<2x1x256xf32> to vector<2x8x256xf32>
    %198 = vector.broadcast %196 : vector<1x8x256xf32> to vector<2x8x256xf32>
    %199 = arith.mulf %197, %198 : vector<2x8x256xf32>
    %200 = arith.addf %190, %199 : vector<2x8x256xf32>
    %c20 = arith.constant 20 : index
    %c0_100 = arith.constant 0 : index
    %c0_101 = arith.constant 0 : index
    %201 = vector.load %arg1[%c20, %c0_100, %c0_101] : memref<36x2x256xf32, #tpu.memory_space<vmem>>, vector<1x2x256xf32>
    %202 = vector.shape_cast %201 : vector<1x2x256xf32> to vector<2x256xf32>
    %203 = vector.shape_cast %202 : vector<2x256xf32> to vector<2x1x256xf32>
    %c20_102 = arith.constant 20 : index
    %c0_103 = arith.constant 0 : index
    %c0_104 = arith.constant 0 : index
    %204 = vector.load %arg2[%c20_102, %c0_103, %c0_104] : memref<36x8x256xf32, #tpu.memory_space<vmem>>, vector<1x8x256xf32>
    %205 = vector.shape_cast %204 : vector<1x8x256xf32> to vector<8x256xf32>
    %206 = vector.shape_cast %205 : vector<8x256xf32> to vector<1x8x256xf32>
    %207 = vector.broadcast %203 : vector<2x1x256xf32> to vector<2x8x256xf32>
    %208 = vector.broadcast %206 : vector<1x8x256xf32> to vector<2x8x256xf32>
    %209 = arith.mulf %207, %208 : vector<2x8x256xf32>
    %210 = arith.addf %200, %209 : vector<2x8x256xf32>
    %c21 = arith.constant 21 : index
    %c0_105 = arith.constant 0 : index
    %c0_106 = arith.constant 0 : index
    %211 = vector.load %arg1[%c21, %c0_105, %c0_106] : memref<36x2x256xf32, #tpu.memory_space<vmem>>, vector<1x2x256xf32>
    %212 = vector.shape_cast %211 : vector<1x2x256xf32> to vector<2x256xf32>
    %213 = vector.shape_cast %212 : vector<2x256xf32> to vector<2x1x256xf32>
    %c21_107 = arith.constant 21 : index
    %c0_108 = arith.constant 0 : index
    %c0_109 = arith.constant 0 : index
    %214 = vector.load %arg2[%c21_107, %c0_108, %c0_109] : memref<36x8x256xf32, #tpu.memory_space<vmem>>, vector<1x8x256xf32>
    %215 = vector.shape_cast %214 : vector<1x8x256xf32> to vector<8x256xf32>
    %216 = vector.shape_cast %215 : vector<8x256xf32> to vector<1x8x256xf32>
    %217 = vector.broadcast %213 : vector<2x1x256xf32> to vector<2x8x256xf32>
    %218 = vector.broadcast %216 : vector<1x8x256xf32> to vector<2x8x256xf32>
    %219 = arith.mulf %217, %218 : vector<2x8x256xf32>
    %220 = arith.addf %210, %219 : vector<2x8x256xf32>
    %c22 = arith.constant 22 : index
    %c0_110 = arith.constant 0 : index
    %c0_111 = arith.constant 0 : index
    %221 = vector.load %arg1[%c22, %c0_110, %c0_111] : memref<36x2x256xf32, #tpu.memory_space<vmem>>, vector<1x2x256xf32>
    %222 = vector.shape_cast %221 : vector<1x2x256xf32> to vector<2x256xf32>
    %223 = vector.shape_cast %222 : vector<2x256xf32> to vector<2x1x256xf32>
    %c22_112 = arith.constant 22 : index
    %c0_113 = arith.constant 0 : index
    %c0_114 = arith.constant 0 : index
    %224 = vector.load %arg2[%c22_112, %c0_113, %c0_114] : memref<36x8x256xf32, #tpu.memory_space<vmem>>, vector<1x8x256xf32>
    %225 = vector.shape_cast %224 : vector<1x8x256xf32> to vector<8x256xf32>
    %226 = vector.shape_cast %225 : vector<8x256xf32> to vector<1x8x256xf32>
    %227 = vector.broadcast %223 : vector<2x1x256xf32> to vector<2x8x256xf32>
    %228 = vector.broadcast %226 : vector<1x8x256xf32> to vector<2x8x256xf32>
    %229 = arith.mulf %227, %228 : vector<2x8x256xf32>
    %230 = arith.addf %220, %229 : vector<2x8x256xf32>
    %c23 = arith.constant 23 : index
    %c0_115 = arith.constant 0 : index
    %c0_116 = arith.constant 0 : index
    %231 = vector.load %arg1[%c23, %c0_115, %c0_116] : memref<36x2x256xf32, #tpu.memory_space<vmem>>, vector<1x2x256xf32>
    %232 = vector.shape_cast %231 : vector<1x2x256xf32> to vector<2x256xf32>
    %233 = vector.shape_cast %232 : vector<2x256xf32> to vector<2x1x256xf32>
    %c23_117 = arith.constant 23 : index
    %c0_118 = arith.constant 0 : index
    %c0_119 = arith.constant 0 : index
    %234 = vector.load %arg2[%c23_117, %c0_118, %c0_119] : memref<36x8x256xf32, #tpu.memory_space<vmem>>, vector<1x8x256xf32>
    %235 = vector.shape_cast %234 : vector<1x8x256xf32> to vector<8x256xf32>
    %236 = vector.shape_cast %235 : vector<8x256xf32> to vector<1x8x256xf32>
    %237 = vector.broadcast %233 : vector<2x1x256xf32> to vector<2x8x256xf32>
    %238 = vector.broadcast %236 : vector<1x8x256xf32> to vector<2x8x256xf32>
    %239 = arith.mulf %237, %238 : vector<2x8x256xf32>
    %240 = arith.addf %230, %239 : vector<2x8x256xf32>
    %c24 = arith.constant 24 : index
    %c0_120 = arith.constant 0 : index
    %c0_121 = arith.constant 0 : index
    %241 = vector.load %arg1[%c24, %c0_120, %c0_121] : memref<36x2x256xf32, #tpu.memory_space<vmem>>, vector<1x2x256xf32>
    %242 = vector.shape_cast %241 : vector<1x2x256xf32> to vector<2x256xf32>
    %243 = vector.shape_cast %242 : vector<2x256xf32> to vector<2x1x256xf32>
    %c24_122 = arith.constant 24 : index
    %c0_123 = arith.constant 0 : index
    %c0_124 = arith.constant 0 : index
    %244 = vector.load %arg2[%c24_122, %c0_123, %c0_124] : memref<36x8x256xf32, #tpu.memory_space<vmem>>, vector<1x8x256xf32>
    %245 = vector.shape_cast %244 : vector<1x8x256xf32> to vector<8x256xf32>
    %246 = vector.shape_cast %245 : vector<8x256xf32> to vector<1x8x256xf32>
    %247 = vector.broadcast %243 : vector<2x1x256xf32> to vector<2x8x256xf32>
    %248 = vector.broadcast %246 : vector<1x8x256xf32> to vector<2x8x256xf32>
    %249 = arith.mulf %247, %248 : vector<2x8x256xf32>
    %250 = arith.addf %240, %249 : vector<2x8x256xf32>
    %c25 = arith.constant 25 : index
    %c0_125 = arith.constant 0 : index
    %c0_126 = arith.constant 0 : index
    %251 = vector.load %arg1[%c25, %c0_125, %c0_126] : memref<36x2x256xf32, #tpu.memory_space<vmem>>, vector<1x2x256xf32>
    %252 = vector.shape_cast %251 : vector<1x2x256xf32> to vector<2x256xf32>
    %253 = vector.shape_cast %252 : vector<2x256xf32> to vector<2x1x256xf32>
    %c25_127 = arith.constant 25 : index
    %c0_128 = arith.constant 0 : index
    %c0_129 = arith.constant 0 : index
    %254 = vector.load %arg2[%c25_127, %c0_128, %c0_129] : memref<36x8x256xf32, #tpu.memory_space<vmem>>, vector<1x8x256xf32>
    %255 = vector.shape_cast %254 : vector<1x8x256xf32> to vector<8x256xf32>
    %256 = vector.shape_cast %255 : vector<8x256xf32> to vector<1x8x256xf32>
    %257 = vector.broadcast %253 : vector<2x1x256xf32> to vector<2x8x256xf32>
    %258 = vector.broadcast %256 : vector<1x8x256xf32> to vector<2x8x256xf32>
    %259 = arith.mulf %257, %258 : vector<2x8x256xf32>
    %260 = arith.addf %250, %259 : vector<2x8x256xf32>
    %c26 = arith.constant 26 : index
    %c0_130 = arith.constant 0 : index
    %c0_131 = arith.constant 0 : index
    %261 = vector.load %arg1[%c26, %c0_130, %c0_131] : memref<36x2x256xf32, #tpu.memory_space<vmem>>, vector<1x2x256xf32>
    %262 = vector.shape_cast %261 : vector<1x2x256xf32> to vector<2x256xf32>
    %263 = vector.shape_cast %262 : vector<2x256xf32> to vector<2x1x256xf32>
    %c26_132 = arith.constant 26 : index
    %c0_133 = arith.constant 0 : index
    %c0_134 = arith.constant 0 : index
    %264 = vector.load %arg2[%c26_132, %c0_133, %c0_134] : memref<36x8x256xf32, #tpu.memory_space<vmem>>, vector<1x8x256xf32>
    %265 = vector.shape_cast %264 : vector<1x8x256xf32> to vector<8x256xf32>
    %266 = vector.shape_cast %265 : vector<8x256xf32> to vector<1x8x256xf32>
    %267 = vector.broadcast %263 : vector<2x1x256xf32> to vector<2x8x256xf32>
    %268 = vector.broadcast %266 : vector<1x8x256xf32> to vector<2x8x256xf32>
    %269 = arith.mulf %267, %268 : vector<2x8x256xf32>
    %270 = arith.addf %260, %269 : vector<2x8x256xf32>
    %c27 = arith.constant 27 : index
    %c0_135 = arith.constant 0 : index
    %c0_136 = arith.constant 0 : index
    %271 = vector.load %arg1[%c27, %c0_135, %c0_136] : memref<36x2x256xf32, #tpu.memory_space<vmem>>, vector<1x2x256xf32>
    %272 = vector.shape_cast %271 : vector<1x2x256xf32> to vector<2x256xf32>
    %273 = vector.shape_cast %272 : vector<2x256xf32> to vector<2x1x256xf32>
    %c27_137 = arith.constant 27 : index
    %c0_138 = arith.constant 0 : index
    %c0_139 = arith.constant 0 : index
    %274 = vector.load %arg2[%c27_137, %c0_138, %c0_139] : memref<36x8x256xf32, #tpu.memory_space<vmem>>, vector<1x8x256xf32>
    %275 = vector.shape_cast %274 : vector<1x8x256xf32> to vector<8x256xf32>
    %276 = vector.shape_cast %275 : vector<8x256xf32> to vector<1x8x256xf32>
    %277 = vector.broadcast %273 : vector<2x1x256xf32> to vector<2x8x256xf32>
    %278 = vector.broadcast %276 : vector<1x8x256xf32> to vector<2x8x256xf32>
    %279 = arith.mulf %277, %278 : vector<2x8x256xf32>
    %280 = arith.addf %270, %279 : vector<2x8x256xf32>
    %c28 = arith.constant 28 : index
    %c0_140 = arith.constant 0 : index
    %c0_141 = arith.constant 0 : index
    %281 = vector.load %arg1[%c28, %c0_140, %c0_141] : memref<36x2x256xf32, #tpu.memory_space<vmem>>, vector<1x2x256xf32>
    %282 = vector.shape_cast %281 : vector<1x2x256xf32> to vector<2x256xf32>
    %283 = vector.shape_cast %282 : vector<2x256xf32> to vector<2x1x256xf32>
    %c28_142 = arith.constant 28 : index
    %c0_143 = arith.constant 0 : index
    %c0_144 = arith.constant 0 : index
    %284 = vector.load %arg2[%c28_142, %c0_143, %c0_144] : memref<36x8x256xf32, #tpu.memory_space<vmem>>, vector<1x8x256xf32>
    %285 = vector.shape_cast %284 : vector<1x8x256xf32> to vector<8x256xf32>
    %286 = vector.shape_cast %285 : vector<8x256xf32> to vector<1x8x256xf32>
    %287 = vector.broadcast %283 : vector<2x1x256xf32> to vector<2x8x256xf32>
    %288 = vector.broadcast %286 : vector<1x8x256xf32> to vector<2x8x256xf32>
    %289 = arith.mulf %287, %288 : vector<2x8x256xf32>
    %290 = arith.addf %280, %289 : vector<2x8x256xf32>
    %c29 = arith.constant 29 : index
    %c0_145 = arith.constant 0 : index
    %c0_146 = arith.constant 0 : index
    %291 = vector.load %arg1[%c29, %c0_145, %c0_146] : memref<36x2x256xf32, #tpu.memory_space<vmem>>, vector<1x2x256xf32>
    %292 = vector.shape_cast %291 : vector<1x2x256xf32> to vector<2x256xf32>
    %293 = vector.shape_cast %292 : vector<2x256xf32> to vector<2x1x256xf32>
    %c29_147 = arith.constant 29 : index
    %c0_148 = arith.constant 0 : index
    %c0_149 = arith.constant 0 : index
    %294 = vector.load %arg2[%c29_147, %c0_148, %c0_149] : memref<36x8x256xf32, #tpu.memory_space<vmem>>, vector<1x8x256xf32>
    %295 = vector.shape_cast %294 : vector<1x8x256xf32> to vector<8x256xf32>
    %296 = vector.shape_cast %295 : vector<8x256xf32> to vector<1x8x256xf32>
    %297 = vector.broadcast %293 : vector<2x1x256xf32> to vector<2x8x256xf32>
    %298 = vector.broadcast %296 : vector<1x8x256xf32> to vector<2x8x256xf32>
    %299 = arith.mulf %297, %298 : vector<2x8x256xf32>
    %300 = arith.addf %290, %299 : vector<2x8x256xf32>
    %c30 = arith.constant 30 : index
    %c0_150 = arith.constant 0 : index
    %c0_151 = arith.constant 0 : index
    %301 = vector.load %arg1[%c30, %c0_150, %c0_151] : memref<36x2x256xf32, #tpu.memory_space<vmem>>, vector<1x2x256xf32>
    %302 = vector.shape_cast %301 : vector<1x2x256xf32> to vector<2x256xf32>
    %303 = vector.shape_cast %302 : vector<2x256xf32> to vector<2x1x256xf32>
    %c30_152 = arith.constant 30 : index
    %c0_153 = arith.constant 0 : index
    %c0_154 = arith.constant 0 : index
    %304 = vector.load %arg2[%c30_152, %c0_153, %c0_154] : memref<36x8x256xf32, #tpu.memory_space<vmem>>, vector<1x8x256xf32>
    %305 = vector.shape_cast %304 : vector<1x8x256xf32> to vector<8x256xf32>
    %306 = vector.shape_cast %305 : vector<8x256xf32> to vector<1x8x256xf32>
    %307 = vector.broadcast %303 : vector<2x1x256xf32> to vector<2x8x256xf32>
    %308 = vector.broadcast %306 : vector<1x8x256xf32> to vector<2x8x256xf32>
    %309 = arith.mulf %307, %308 : vector<2x8x256xf32>
    %310 = arith.addf %300, %309 : vector<2x8x256xf32>
    %c31 = arith.constant 31 : index
    %c0_155 = arith.constant 0 : index
    %c0_156 = arith.constant 0 : index
    %311 = vector.load %arg1[%c31, %c0_155, %c0_156] : memref<36x2x256xf32, #tpu.memory_space<vmem>>, vector<1x2x256xf32>
    %312 = vector.shape_cast %311 : vector<1x2x256xf32> to vector<2x256xf32>
    %313 = vector.shape_cast %312 : vector<2x256xf32> to vector<2x1x256xf32>
    %c31_157 = arith.constant 31 : index
    %c0_158 = arith.constant 0 : index
    %c0_159 = arith.constant 0 : index
    %314 = vector.load %arg2[%c31_157, %c0_158, %c0_159] : memref<36x8x256xf32, #tpu.memory_space<vmem>>, vector<1x8x256xf32>
    %315 = vector.shape_cast %314 : vector<1x8x256xf32> to vector<8x256xf32>
    %316 = vector.shape_cast %315 : vector<8x256xf32> to vector<1x8x256xf32>
    %317 = vector.broadcast %313 : vector<2x1x256xf32> to vector<2x8x256xf32>
    %318 = vector.broadcast %316 : vector<1x8x256xf32> to vector<2x8x256xf32>
    %319 = arith.mulf %317, %318 : vector<2x8x256xf32>
    %320 = arith.addf %310, %319 : vector<2x8x256xf32>
    %c32 = arith.constant 32 : index
    %c0_160 = arith.constant 0 : index
    %c0_161 = arith.constant 0 : index
    %321 = vector.load %arg1[%c32, %c0_160, %c0_161] : memref<36x2x256xf32, #tpu.memory_space<vmem>>, vector<1x2x256xf32>
    %322 = vector.shape_cast %321 : vector<1x2x256xf32> to vector<2x256xf32>
    %323 = vector.shape_cast %322 : vector<2x256xf32> to vector<2x1x256xf32>
    %c32_162 = arith.constant 32 : index
    %c0_163 = arith.constant 0 : index
    %c0_164 = arith.constant 0 : index
    %324 = vector.load %arg2[%c32_162, %c0_163, %c0_164] : memref<36x8x256xf32, #tpu.memory_space<vmem>>, vector<1x8x256xf32>
    %325 = vector.shape_cast %324 : vector<1x8x256xf32> to vector<8x256xf32>
    %326 = vector.shape_cast %325 : vector<8x256xf32> to vector<1x8x256xf32>
    %327 = vector.broadcast %323 : vector<2x1x256xf32> to vector<2x8x256xf32>
    %328 = vector.broadcast %326 : vector<1x8x256xf32> to vector<2x8x256xf32>
    %329 = arith.mulf %327, %328 : vector<2x8x256xf32>
    %330 = arith.addf %320, %329 : vector<2x8x256xf32>
    %c33 = arith.constant 33 : index
    %c0_165 = arith.constant 0 : index
    %c0_166 = arith.constant 0 : index
    %331 = vector.load %arg1[%c33, %c0_165, %c0_166] : memref<36x2x256xf32, #tpu.memory_space<vmem>>, vector<1x2x256xf32>
    %332 = vector.shape_cast %331 : vector<1x2x256xf32> to vector<2x256xf32>
    %333 = vector.shape_cast %332 : vector<2x256xf32> to vector<2x1x256xf32>
    %c33_167 = arith.constant 33 : index
    %c0_168 = arith.constant 0 : index
    %c0_169 = arith.constant 0 : index
    %334 = vector.load %arg2[%c33_167, %c0_168, %c0_169] : memref<36x8x256xf32, #tpu.memory_space<vmem>>, vector<1x8x256xf32>
    %335 = vector.shape_cast %334 : vector<1x8x256xf32> to vector<8x256xf32>
    %336 = vector.shape_cast %335 : vector<8x256xf32> to vector<1x8x256xf32>
    %337 = vector.broadcast %333 : vector<2x1x256xf32> to vector<2x8x256xf32>
    %338 = vector.broadcast %336 : vector<1x8x256xf32> to vector<2x8x256xf32>
    %339 = arith.mulf %337, %338 : vector<2x8x256xf32>
    %340 = arith.addf %330, %339 : vector<2x8x256xf32>
    %c34 = arith.constant 34 : index
    %c0_170 = arith.constant 0 : index
    %c0_171 = arith.constant 0 : index
    %341 = vector.load %arg1[%c34, %c0_170, %c0_171] : memref<36x2x256xf32, #tpu.memory_space<vmem>>, vector<1x2x256xf32>
    %342 = vector.shape_cast %341 : vector<1x2x256xf32> to vector<2x256xf32>
    %343 = vector.shape_cast %342 : vector<2x256xf32> to vector<2x1x256xf32>
    %c34_172 = arith.constant 34 : index
    %c0_173 = arith.constant 0 : index
    %c0_174 = arith.constant 0 : index
    %344 = vector.load %arg2[%c34_172, %c0_173, %c0_174] : memref<36x8x256xf32, #tpu.memory_space<vmem>>, vector<1x8x256xf32>
    %345 = vector.shape_cast %344 : vector<1x8x256xf32> to vector<8x256xf32>
    %346 = vector.shape_cast %345 : vector<8x256xf32> to vector<1x8x256xf32>
    %347 = vector.broadcast %343 : vector<2x1x256xf32> to vector<2x8x256xf32>
    %348 = vector.broadcast %346 : vector<1x8x256xf32> to vector<2x8x256xf32>
    %349 = arith.mulf %347, %348 : vector<2x8x256xf32>
    %350 = arith.addf %340, %349 : vector<2x8x256xf32>
    %c35 = arith.constant 35 : index
    %c0_175 = arith.constant 0 : index
    %c0_176 = arith.constant 0 : index
    %351 = vector.load %arg1[%c35, %c0_175, %c0_176] : memref<36x2x256xf32, #tpu.memory_space<vmem>>, vector<1x2x256xf32>
    %352 = vector.shape_cast %351 : vector<1x2x256xf32> to vector<2x256xf32>
    %353 = vector.shape_cast %352 : vector<2x256xf32> to vector<2x1x256xf32>
    %c35_177 = arith.constant 35 : index
    %c0_178 = arith.constant 0 : index
    %c0_179 = arith.constant 0 : index
    %354 = vector.load %arg2[%c35_177, %c0_178, %c0_179] : memref<36x8x256xf32, #tpu.memory_space<vmem>>, vector<1x8x256xf32>
    %355 = vector.shape_cast %354 : vector<1x8x256xf32> to vector<8x256xf32>
    %356 = vector.shape_cast %355 : vector<8x256xf32> to vector<1x8x256xf32>
    %357 = vector.broadcast %353 : vector<2x1x256xf32> to vector<2x8x256xf32>
    %358 = vector.broadcast %356 : vector<1x8x256xf32> to vector<2x8x256xf32>
    %359 = arith.mulf %357, %358 : vector<2x8x256xf32>
    %360 = arith.addf %350, %359 : vector<2x8x256xf32>
    %c0_180 = arith.constant 0 : index
    %c0_181 = arith.constant 0 : index
    %c0_182 = arith.constant 0 : index
    %361 = vector.load %arg3[%c0_180, %c0_181, %c0_182] : memref<1x8x256xf32, #tpu.memory_space<vmem>>, vector<1x8x256xf32>
    %362 = vector.broadcast %361 : vector<1x8x256xf32> to vector<2x8x256xf32>
    %363 = arith.addf %360, %362 : vector<2x8x256xf32>
    %cst_183 = arith.constant dense<0.000000e+00> : vector<2x8xf32>
    %364 = vector.multi_reduction <add>, %363, %cst_183 [2] : vector<2x8x256xf32> to vector<2x8xf32>
    %365 = vector.shape_cast %364 : vector<2x8xf32> to vector<2x8x1xf32>
    %cst_184 = arith.constant dense<0.000000e+00> : vector<8x1xf32>
    %366 = vector.multi_reduction <add>, %365, %cst_184 [0] : vector<2x8x1xf32> to vector<8x1xf32>
    %367 = vector.shape_cast %366 : vector<8x1xf32> to vector<1x8x1xf32>
    %cst_185 = arith.constant 0.001953125 : f32
    %368 = vector.broadcast %cst_185 : f32 to vector<1x8x1xf32>
    %369 = arith.mulf %367, %368 : vector<1x8x1xf32>
    %370 = vector.broadcast %369 : vector<1x8x1xf32> to vector<2x8x256xf32>
    %371 = arith.subf %363, %370 : vector<2x8x256xf32>
    %372 = arith.mulf %371, %371 : vector<2x8x256xf32>
    %cst_186 = arith.constant dense<0.000000e+00> : vector<2x8xf32>
    %373 = vector.multi_reduction <add>, %372, %cst_186 [2] : vector<2x8x256xf32> to vector<2x8xf32>
    %374 = vector.shape_cast %373 : vector<2x8xf32> to vector<2x8x1xf32>
    %cst_187 = arith.constant dense<0.000000e+00> : vector<8x1xf32>
    %375 = vector.multi_reduction <add>, %374, %cst_187 [0] : vector<2x8x1xf32> to vector<8x1xf32>
    %376 = vector.shape_cast %375 : vector<8x1xf32> to vector<1x8x1xf32>
    %cst_188 = arith.constant 0.001953125 : f32
    %377 = vector.broadcast %cst_188 : f32 to vector<1x8x1xf32>
    %378 = arith.mulf %376, %377 : vector<1x8x1xf32>
    %c0_189 = arith.constant 0 : index
    %c0_190 = arith.constant 0 : index
    %c0_191 = arith.constant 0 : index
    %379 = vector.load %arg4[%c0_189, %c0_190, %c0_191] : memref<1x8x1xf32, #tpu.memory_space<vmem>>, vector<1x8x1xf32>
    %cst_192 = arith.constant 9.99999974E-6 : f32
    %380 = vector.broadcast %cst_192 : f32 to vector<1x8x1xf32>
    %381 = arith.addf %378, %380 : vector<1x8x1xf32>
    %382 = math.rsqrt %381 : vector<1x8x1xf32>
    %383 = arith.mulf %379, %382 : vector<1x8x1xf32>
    %384 = vector.broadcast %383 : vector<1x8x1xf32> to vector<2x8x256xf32>
    %385 = arith.mulf %371, %384 : vector<2x8x256xf32>
    %c0_193 = arith.constant 0 : index
    %c0_194 = arith.constant 0 : index
    %c0_195 = arith.constant 0 : index
    %386 = vector.load %arg5[%c0_193, %c0_194, %c0_195] : memref<1x8x1xf32, #tpu.memory_space<vmem>>, vector<1x8x1xf32>
    %387 = vector.broadcast %386 : vector<1x8x1xf32> to vector<2x8x256xf32>
    %388 = arith.addf %385, %387 : vector<2x8x256xf32>
    %cst_196 = arith.constant 0.000000e+00 : f32
    %389 = vector.broadcast %cst_196 : f32 to vector<2x8x256xf32>
    %390 = arith.maximumf %388, %389 : vector<2x8x256xf32>
    %c0_197 = arith.constant 0 : index
    %c0_198 = arith.constant 0 : index
    %c0_199 = arith.constant 0 : index
    %391 = vector.load %arg6[%c0_197, %c0_198, %c0_199] : memref<2x8x256xf32, #tpu.memory_space<vmem>>, vector<2x8x256xf32>
    tpu.vector_store %arg6[%c0_197, %c0_198, %c0_199], %390 {strides = array<i32>} : memref<2x8x256xf32, #tpu.memory_space<vmem>>, vector<2x8x256xf32>,
    return
  }
  func.func @transform_0(%arg0: i32) -> (i32, i32, i32) {
    %c0_i32 = arith.constant 0 : i32
    %c0_i32_0 = arith.constant 0 : i32
    %c0_i32_1 = arith.constant 0 : i32
    %c0_i32_2 = arith.constant 0 : i32
    return %c0_i32, %c0_i32_0, %c0_i32_1 : i32, i32, i32
  }
  func.func @transform_1(%arg0: i32) -> (i32, i32, i32) {
    %c0_i32 = arith.constant 0 : i32
    %c0_i32_0 = arith.constant 0 : i32
    %c0_i32_1 = arith.constant 0 : i32
    return %c0_i32, %arg0, %c0_i32_0 : i32, i32, i32
  }
  func.func @transform_2(%arg0: i32) -> (i32, i32, i32) {
    %c0_i32 = arith.constant 0 : i32
    %c0_i32_0 = arith.constant 0 : i32
    %c0_i32_1 = arith.constant 0 : i32
    return %c0_i32, %arg0, %c0_i32_0 : i32, i32, i32
  }
  func.func @transform_3(%arg0: i32) -> (i32, i32, i32) {
    %c0_i32 = arith.constant 0 : i32
    %c0_i32_0 = arith.constant 0 : i32
    %c0_i32_1 = arith.constant 0 : i32
    return %c0_i32, %arg0, %c0_i32_0 : i32, i32, i32
  }
  func.func @transform_4(%arg0: i32) -> (i32, i32, i32) {
    %c0_i32 = arith.constant 0 : i32
    %c0_i32_0 = arith.constant 0 : i32
    %c0_i32_1 = arith.constant 0 : i32
    return %c0_i32, %arg0, %c0_i32_0 : i32, i32, i32
  }
  func.func @transform_5(%arg0: i32) -> (i32, i32, i32) {
    %c0_i32 = arith.constant 0 : i32
    %c0_i32_0 = arith.constant 0 : i32
    %c0_i32_1 = arith.constant 0 : i32
    return %c0_i32, %arg0, %c0_i32_0 : i32, i32, i32
  }
}

</mosaic_0001>

<llo_original>
// kernel: ll_custom_forward.1
$region0: #{ll_custom_forward.1}
  #allocation0 [shape = 'u32[]', space=smem, size = 0x4, offset = 0x4, fixed_abs, tag = 'smem constant byte address 0x4 - core index']
  #allocation1 [shape = 'u32[144,128]{1,0:T(1,128)}', space=vmem, size = 0x12000, scoped, tag = 'internal scratch']
  %s0 = inlined_call_operand.vmem [shape: f32[36,2,256], index: 0, kind: input, shape index: {}]
  %s1 = inlined_call_operand.vmem [shape: f32[36,8,256], index: 1, kind: input, shape index: {}]
  %s2 = inlined_call_operand.vmem [shape: f32[1,8,256], index: 2, kind: input, shape index: {}]
  %s3 = inlined_call_operand.vmem [shape: f32[1,8,1], index: 3, kind: input, shape index: {}]
  %s4 = inlined_call_operand.vmem [shape: f32[1,8,1], index: 4, kind: input, shape index: {}]
  %s5 = inlined_call_operand.vmem [shape: f32[2,8,256], index: 5, kind: output, shape index: {}]
  %s6 = sld [smem:[#allocation0]]
  $region30: #{ll_custom_forward.1} parent=0
    _
  %s8 = ssub.s32 1, %s6
  %s9 = scalar_select 0, %s8, %s6
  // Predicated region
  $region2: #{ll_custom_forward.1} parent=0 // pred_check
    _
  $region3: #{ll_custom_forward.1} parent=0 // pred_check_branch
    %11 = sbr.rel (0) target = $region5
  $region4: #{ll_custom_forward.1} parent=0 // pred_region
    _
  $region5: #{ll_custom_forward.1} parent=0 // pred_fallthru
    _
  // Predicated region
  $region6: #{ll_custom_forward.1} parent=0 // pred_check
    _
  $region7: #{ll_custom_forward.1} parent=0 // pred_check_branch
    %13 = sbr.rel (0) target = $region9
  $region8: #{ll_custom_forward.1} parent=0 // pred_region
    _
  $region9: #{ll_custom_forward.1} parent=0 // pred_fallthru
    _
  // Predicated region
  $region10: #{ll_custom_forward.1} parent=0 // pred_check
    _
  $region11: #{ll_custom_forward.1} parent=0 // pred_check_branch
    %15 = sbr.rel (0) target = $region13
  $region12: #{ll_custom_forward.1} parent=0 // pred_region
    _
  $region13: #{ll_custom_forward.1} parent=0 // pred_fallthru
    _
  // Predicated region
  $region14: #{ll_custom_forward.1} parent=0 // pred_check
    _
  $region15: #{ll_custom_forward.1} parent=0 // pred_check_branch
    %17 = sbr.rel (0) target = $region17
  $region16: #{ll_custom_forward.1} parent=0 // pred_region
    _
  $region17: #{ll_custom_forward.1} parent=0 // pred_fallthru
    _
  // Predicated region
  $region18: #{ll_custom_forward.1} parent=0 // pred_check
    _
  $region19: #{ll_custom_forward.1} parent=0 // pred_check_branch
    %19 = sbr.rel (0) target = $region21
  $region20: #{ll_custom_forward.1} parent=0 // pred_region
    _
  $region21: #{ll_custom_forward.1} parent=0 // pred_fallthru
    _
  %v20 = vld [vmem:[%s0] sm:$0xf]
  %v23 = vunpack.c.l.s4 1966171168
  %v24 = vunpack.c.0.s8 %v23
  %v25 = vlaneseq
  %v26 = vshrl.u32 %v25, 7
  %v27 = vsub.s32 %v24, %v26
  %v28 = vrot.slane %v20, %v27
  %v29 = vcombine.high %v28, %v28
  %v30 = vld [vmem:[%s1] sm:$0xff]
  %v31 = vld [vmem:[%s1 + $0x8] sm:$0xff]
  %v32 = vlaneseq
  %v33 = vshrl.u32 %v32, 7
  %v34 = vsub.s32 0, %v33
  %v35 = vrot.slane %v28, %v34
  %v36 = vlaneseq
  %v37 = vshrl.u32 %v36, 7
  %v38 = vsub.s32 1, %v37
  %v39 = vrot.slane %v28, %v38
  %v40 = vlaneseq
  %v41 = vshrl.u32 %v40, 7
  %v42 = vsub.s32 0, %v41
  %v43 = vrot.slane %v29, %v42
  %v44 = vlaneseq
  %v45 = vshrl.u32 %v44, 7
  %v46 = vsub.s32 1, %v45
  %v47 = vrot.slane %v29, %v46
  %v52 = vmul.f32 %v35, %v30
  %v53 = vmul.f32 %v39, %v31
  %v54 = vmul.f32 %v43, %v30
  %v55 = vmul.f32 %v47, %v31
  %v56 = vadd.f32 %v52, 0.0
  %v57 = vadd.f32 %v53, 0.0
  %v58 = vadd.f32 %v54, 0.0
  %v59 = vadd.f32 %v55, 0.0
  %s60 = scalar_lea.vmem %s0, 4
  %v61 = vld [vmem:[%s60] sm:$0xf]
  %v64 = vunpack.c.l.s4 1966171168
  %v65 = vunpack.c.0.s8 %v64
  %v66 = vlaneseq
  %v67 = vshrl.u32 %v66, 7
  %v68 = vsub.s32 %v65, %v67
  %v69 = vrot.slane %v61, %v68
  %v70 = vcombine.high %v69, %v69
  %s71 = scalar_lea.vmem %s1, 16
  %v72 = vld [vmem:[%s71] sm:$0xff]
  %v73 = vld [vmem:[%s71 + $0x8] sm:$0xff]
  %v74 = vlaneseq
  %v75 = vshrl.u32 %v74, 7
  %v76 = vsub.s32 0, %v75
  %v77 = vrot.slane %v69, %v76
  %v78 = vlaneseq
  %v79 = vshrl.u32 %v78, 7
  %v80 = vsub.s32 1, %v79
  %v81 = vrot.slane %v69, %v80
  %v82 = vlaneseq
  %v83 = vshrl.u32 %v82, 7
  %v84 = vsub.s32 0, %v83
  %v85 = vrot.slane %v70, %v84
  %v86 = vlaneseq
  %v87 = vshrl.u32 %v86, 7
  %v88 = vsub.s32 1, %v87
  %v89 = vrot.slane %v70, %v88
  %v94 = vmul.f32 %v77, %v72
  %v95 = vmul.f32 %v81, %v73
  %v96 = vmul.f32 %v85, %v72
  %v97 = vmul.f32 %v89, %v73
  %v98 = vadd.f32 %v56, %v94
  %v99 = vadd.f32 %v57, %v95
  %v100 = vadd.f32 %v58, %v96
  %v101 = vadd.f32 %v59, %v97
  %s102 = scalar_lea.vmem %s0, 8
  %v103 = vld [vmem:[%s102] sm:$0xf]
  %v106 = vunpack.c.l.s4 1966171168
  %v107 = vunpack.c.0.s8 %v106
  %v108 = vlaneseq
  %v109 = vshrl.u32 %v108, 7
  %v110 = vsub.s32 %v107, %v109
  %v111 = vrot.slane %v103, %v110
  %v112 = vcombine.high %v111, %v111
  %s113 = scalar_lea.vmem %s1, 32
  %v114 = vld [vmem:[%s113] sm:$0xff]
  %v115 = vld [vmem:[%s113 + $0x8] sm:$0xff]
  %v116 = vlaneseq
  %v117 = vshrl.u32 %v116, 7
  %v118 = vsub.s32 0, %v117
  %v119 = vrot.slane %v111, %v118
  %v120 = vlaneseq
  %v121 = vshrl.u32 %v120, 7
  %v122 = vsub.s32 1, %v121
  %v123 = vrot.slane %v111, %v122
  %v124 = vlaneseq
  %v125 = vshrl.u32 %v124, 7
  %v126 = vsub.s32 0, %v125
  %v127 = vrot.slane %v112, %v126
  %v128 = vlaneseq
  %v129 = vshrl.u32 %v128, 7
  %v130 = vsub.s32 1, %v129
  %v131 = vrot.slane %v112, %v130
  %v136 = vmul.f32 %v119, %v114
  %v137 = vmul.f32 %v123, %v115
  %v138 = vmul.f32 %v127, %v114
  %v139 = vmul.f32 %v131, %v115
  %v140 = vadd.f32 %v98, %v136
  %v141 = vadd.f32 %v99, %v137
  %v142 = vadd.f32 %v100, %v138
  %v143 = vadd.f32 %v101, %v139
  %s144 = scalar_lea.vmem %s0, 12
  %v145 = vld [vmem:[%s144] sm:$0xf]
  %v148 = vunpack.c.l.s4 1966171168
  %v149 = vunpack.c.0.s8 %v148
  %v150 = vlaneseq
  %v151 = vshrl.u32 %v150, 7
  %v152 = vsub.s32 %v149, %v151
  %v153 = vrot.slane %v145, %v152
  %v154 = vcombine.high %v153, %v153
  %s155 = scalar_lea.vmem %s1, 48
  %v156 = vld [vmem:[%s155] sm:$0xff]
  %v157 = vld [vmem:[%s155 + $0x8] sm:$0xff]
  %v158 = vlaneseq
  %v159 = vshrl.u32 %v158, 7
  %v160 = vsub.s32 0, %v159
  %v161 = vrot.slane %v153, %v160
  %v162 = vlaneseq
  %v163 = vshrl.u32 %v162, 7
  %v164 = vsub.s32 1, %v163
  %v165 = vrot.slane %v153, %v164
  %v166 = vlaneseq
  %v167 = vshrl.u32 %v166, 7
  %v168 = vsub.s32 0, %v167
  %v169 = vrot.slane %v154, %v168
  %v170 = vlaneseq
  %v171 = vshrl.u32 %v170, 7
  %v172 = vsub.s32 1, %v171
  %v173 = vrot.slane %v154, %v172
  %v178 = vmul.f32 %v161, %v156
  %v179 = vmul.f32 %v165, %v157
  %v180 = vmul.f32 %v169, %v156
  %v181 = vmul.f32 %v173, %v157
  %v182 = vadd.f32 %v140, %v178
  %v183 = vadd.f32 %v141, %v179
  %v184 = vadd.f32 %v142, %v180
  %v185 = vadd.f32 %v143, %v181
  %s186 = scalar_lea.vmem %s0, 16
  %v187 = vld [vmem:[%s186] sm:$0xf]
  %v190 = vunpack.c.l.s4 1966171168
  %v191 = vunpack.c.0.s8 %v190
  %v192 = vlaneseq
  %v193 = vshrl.u32 %v192, 7
  %v194 = vsub.s32 %v191, %v193
  %v195 = vrot.slane %v187, %v194
  %v196 = vcombine.high %v195, %v195
  %s197 = scalar_lea.vmem %s1, 64
  %v198 = vld [vmem:[%s197] sm:$0xff]
  %v199 = vld [vmem:[%s197 + $0x8] sm:$0xff]
  %v200 = vlaneseq
  %v201 = vshrl.u32 %v200, 7
  %v202 = vsub.s32 0, %v201
  %v203 = vrot.slane %v195, %v202
  %v204 = vlaneseq
  %v205 = vshrl.u32 %v204, 7
  %v206 = vsub.s32 1, %v205
  %v207 = vrot.slane %v195, %v206
  %v208 = vlaneseq
  %v209 = vshrl.u32 %v208, 7
  %v210 = vsub.s32 0, %v209
  %v211 = vrot.slane %v196, %v210
  %v212 = vlaneseq
  %v213 = vshrl.u32 %v212, 7
  %v214 = vsub.s32 1, %v213
  %v215 = vrot.slane %v196, %v214
  %v220 = vmul.f32 %v203, %v198
  %v221 = vmul.f32 %v207, %v199
  %v222 = vmul.f32 %v211, %v198
  %v223 = vmul.f32 %v215, %v199
  %v224 = vadd.f32 %v182, %v220
  %v225 = vadd.f32 %v183, %v221
  %v226 = vadd.f32 %v184, %v222
  %v227 = vadd.f32 %v185, %v223
  %s228 = scalar_lea.vmem %s0, 20
  %v229 = vld [vmem:[%s228] sm:$0xf]
  %v232 = vunpack.c.l.s4 1966171168
  %v233 = vunpack.c.0.s8 %v232
  %v234 = vlaneseq
  %v235 = vshrl.u32 %v234, 7
  %v236 = vsub.s32 %v233, %v235
  %v237 = vrot.slane %v229, %v236
  %v238 = vcombine.high %v237, %v237
  %s239 = scalar_lea.vmem %s1, 80
  %v240 = vld [vmem:[%s239] sm:$0xff]
  %v241 = vld [vmem:[%s239 + $0x8] sm:$0xff]
  %v242 = vlaneseq
  %v243 = vshrl.u32 %v242, 7
  %v244 = vsub.s32 0, %v243
  %v245 = vrot.slane %v237, %v244
  %v246 = vlaneseq
  %v247 = vshrl.u32 %v246, 7
  %v248 = vsub.s32 1, %v247
  %v249 = vrot.slane %v237, %v248
  %v250 = vlaneseq
  %v251 = vshrl.u32 %v250, 7
  %v252 = vsub.s32 0, %v251
  %v253 = vrot.slane %v238, %v252
  %v254 = vlaneseq
  %v255 = vshrl.u32 %v254, 7
  %v256 = vsub.s32 1, %v255
  %v257 = vrot.slane %v238, %v256
  %v262 = vmul.f32 %v245, %v240
  %v263 = vmul.f32 %v249, %v241
  %v264 = vmul.f32 %v253, %v240
  %v265 = vmul.f32 %v257, %v241
  %v266 = vadd.f32 %v224, %v262
  %v267 = vadd.f32 %v225, %v263
  %v268 = vadd.f32 %v226, %v264
  %v269 = vadd.f32 %v227, %v265
  %s270 = scalar_lea.vmem %s0, 24
  %v271 = vld [vmem:[%s270] sm:$0xf]
  %v274 = vunpack.c.l.s4 1966171168
  %v275 = vunpack.c.0.s8 %v274
  %v276 = vlaneseq
  %v277 = vshrl.u32 %v276, 7
  %v278 = vsub.s32 %v275, %v277
  %v279 = vrot.slane %v271, %v278
  %v280 = vcombine.high %v279, %v279
  %s281 = scalar_lea.vmem %s1, 96
  %v282 = vld [vmem:[%s281] sm:$0xff]
  %v283 = vld [vmem:[%s281 + $0x8] sm:$0xff]
  %v284 = vlaneseq
  %v285 = vshrl.u32 %v284, 7
  %v286 = vsub.s32 0, %v285
  %v287 = vrot.slane %v279, %v286
  %v288 = vlaneseq
  %v289 = vshrl.u32 %v288, 7
  %v290 = vsub.s32 1, %v289
  %v291 = vrot.slane %v279, %v290
  %v292 = vlaneseq
  %v293 = vshrl.u32 %v292, 7
  %v294 = vsub.s32 0, %v293
  %v295 = vrot.slane %v280, %v294
  %v296 = vlaneseq
  %v297 = vshrl.u32 %v296, 7
  %v298 = vsub.s32 1, %v297
  %v299 = vrot.slane %v280, %v298
  %v304 = vmul.f32 %v287, %v282
  %v305 = vmul.f32 %v291, %v283
  %v306 = vmul.f32 %v295, %v282
  %v307 = vmul.f32 %v299, %v283
  %v308 = vadd.f32 %v266, %v304
  %v309 = vadd.f32 %v267, %v305
  %v310 = vadd.f32 %v268, %v306
  %v311 = vadd.f32 %v269, %v307
  %s312 = scalar_lea.vmem %s0, 28
  %v313 = vld [vmem:[%s312] sm:$0xf]
  %v316 = vunpack.c.l.s4 1966171168
  %v317 = vunpack.c.0.s8 %v316
  %v318 = vlaneseq
  %v319 = vshrl.u32 %v318, 7
  %v320 = vsub.s32 %v317, %v319
  %v321 = vrot.slane %v313, %v320
  %v322 = vcombine.high %v321, %v321
  %s323 = scalar_lea.vmem %s1, 112
  %v324 = vld [vmem:[%s323] sm:$0xff]
  %v325 = vld [vmem:[%s323 + $0x8] sm:$0xff]
  %v326 = vlaneseq
  %v327 = vshrl.u32 %v326, 7
  %v328 = vsub.s32 0, %v327
  %v329 = vrot.slane %v321, %v328
  %v330 = vlaneseq
  %v331 = vshrl.u32 %v330, 7
  %v332 = vsub.s32 1, %v331
  %v333 = vrot.slane %v321, %v332
  %v334 = vlaneseq
  %v335 = vshrl.u32 %v334, 7
  %v336 = vsub.s32 0, %v335
  %v337 = vrot.slane %v322, %v336
  %v338 = vlaneseq
  %v339 = vshrl.u32 %v338, 7
  %v340 = vsub.s32 1, %v339
  %v341 = vrot.slane %v322, %v340
  %v346 = vmul.f32 %v329, %v324
  %v347 = vmul.f32 %v333, %v325
  %v348 = vmul.f32 %v337, %v324
  %v349 = vmul.f32 %v341, %v325
  %v350 = vadd.f32 %v308, %v346
  %v351 = vadd.f32 %v309, %v347
  %v352 = vadd.f32 %v310, %v348
  %v353 = vadd.f32 %v311, %v349
  %s354 = scalar_lea.vmem %s0, 32
  %v355 = vld [vmem:[%s354] sm:$0xf]
  %v358 = vunpack.c.l.s4 1966171168
  %v359 = vunpack.c.0.s8 %v358
  %v360 = vlaneseq
  %v361 = vshrl.u32 %v360, 7
  %v362 = vsub.s32 %v359, %v361
  %v363 = vrot.slane %v355, %v362
  %v364 = vcombine.high %v363, %v363
  %s365 = scalar_lea.vmem %s1, 128
  %v366 = vld [vmem:[%s365] sm:$0xff]
  %v367 = vld [vmem:[%s365 + $0x8] sm:$0xff]
  %v368 = vlaneseq
  %v369 = vshrl.u32 %v368, 7
  %v370 = vsub.s32 0, %v369
  %v371 = vrot.slane %v363, %v370
  %v372 = vlaneseq
  %v373 = vshrl.u32 %v372, 7
  %v374 = vsub.s32 1, %v373
  %v375 = vrot.slane %v363, %v374
  %v376 = vlaneseq
  %v377 = vshrl.u32 %v376, 7
  %v378 = vsub.s32 0, %v377
  %v379 = vrot.slane %v364, %v378
  %v380 = vlaneseq
  %v381 = vshrl.u32 %v380, 7
  %v382 = vsub.s32 1, %v381
  %v383 = vrot.slane %v364, %v382
  %v388 = vmul.f32 %v371, %v366
  %v389 = vmul.f32 %v375, %v367
  %v390 = vmul.f32 %v379, %v366
  %v391 = vmul.f32 %v383, %v367
  %v392 = vadd.f32 %v350, %v388
  %v393 = vadd.f32 %v351, %v389
  %v394 = vadd.f32 %v352, %v390
  %v395 = vadd.f32 %v353, %v391
  %s396 = scalar_lea.vmem %s0, 36
  %v397 = vld [vmem:[%s396] sm:$0xf]
  %v400 = vunpack.c.l.s4 1966171168
  %v401 = vunpack.c.0.s8 %v400
  %v402 = vlaneseq
  %v403 = vshrl.u32 %v402, 7
  %v404 = vsub.s32 %v401, %v403
  %v405 = vrot.slane %v397, %v404
  %v406 = vcombine.high %v405, %v405
  %s407 = scalar_lea.vmem %s1, 144
  %v408 = vld [vmem:[%s407] sm:$0xff]
  %v409 = vld [vmem:[%s407 + $0x8] sm:$0xff]
  %v410 = vlaneseq
  %v411 = vshrl.u32 %v410, 7
  %v412 = vsub.s32 0, %v411
  %v413 = vrot.slane %v405, %v412
  %v414 = vlaneseq
  %v415 = vshrl.u32 %v414, 7
  %v416 = vsub.s32 1, %v415
  %v417 = vrot.slane %v405, %v416
  %v418 = vlaneseq
  %v419 = vshrl.u32 %v418, 7
  %v420 = vsub.s32 0, %v419
  %v421 = vrot.slane %v406, %v420
  %v422 = vlaneseq
  %v423 = vshrl.u32 %v422, 7
  %v424 = vsub.s32 1, %v423
  %v425 = vrot.slane %v406, %v424
  %v430 = vmul.f32 %v413, %v408
  %v431 = vmul.f32 %v417, %v409
  %v432 = vmul.f32 %v421, %v408
  %v433 = vmul.f32 %v425, %v409
  %v434 = vadd.f32 %v392, %v430
  %v435 = vadd.f32 %v393, %v431
  %v436 = vadd.f32 %v394, %v432
  %v437 = vadd.f32 %v395, %v433
  %s438 = scalar_lea.vmem %s0, 40
  %v439 = vld [vmem:[%s438] sm:$0xf]
  %v442 = vunpack.c.l.s4 1966171168
  %v443 = vunpack.c.0.s8 %v442
  %v444 = vlaneseq
  %v445 = vshrl.u32 %v444, 7
  %v446 = vsub.s32 %v443, %v445
  %v447 = vrot.slane %v439, %v446
  %v448 = vcombine.high %v447, %v447
  %s449 = scalar_lea.vmem %s1, 160
  %v450 = vld [vmem:[%s449] sm:$0xff]
  %v451 = vld [vmem:[%s449 + $0x8] sm:$0xff]
  %v452 = vlaneseq
  %v453 = vshrl.u32 %v452, 7
  %v454 = vsub.s32 0, %v453
  %v455 = vrot.slane %v447, %v454
  %v456 = vlaneseq
  %v457 = vshrl.u32 %v456, 7
  %v458 = vsub.s32 1, %v457
  %v459 = vrot.slane %v447, %v458
  %v460 = vlaneseq
  %v461 = vshrl.u32 %v460, 7
  %v462 = vsub.s32 0, %v461
  %v463 = vrot.slane %v448, %v462
  %v464 = vlaneseq
  %v465 = vshrl.u32 %v464, 7
  %v466 = vsub.s32 1, %v465
  %v467 = vrot.slane %v448, %v466
  %v472 = vmul.f32 %v455, %v450
  %v473 = vmul.f32 %v459, %v451
  %v474 = vmul.f32 %v463, %v450
  %v475 = vmul.f32 %v467, %v451
  %v476 = vadd.f32 %v434, %v472
  %v477 = vadd.f32 %v435, %v473
  %v478 = vadd.f32 %v436, %v474
  %v479 = vadd.f32 %v437, %v475
  %s480 = scalar_lea.vmem %s0, 44
  %v481 = vld [vmem:[%s480] sm:$0xf]
  %v484 = vunpack.c.l.s4 1966171168
  %v485 = vunpack.c.0.s8 %v484
  %v486 = vlaneseq
  %v487 = vshrl.u32 %v486, 7
  %v488 = vsub.s32 %v485, %v487
  %v489 = vrot.slane %v481, %v488
  %v490 = vcombine.high %v489, %v489
  %s491 = scalar_lea.vmem %s1, 176
  %v492 = vld [vmem:[%s491] sm:$0xff]
  %v493 = vld [vmem:[%s491 + $0x8] sm:$0xff]
  %v494 = vlaneseq
  %v495 = vshrl.u32 %v494, 7
  %v496 = vsub.s32 0, %v495
  %v497 = vrot.slane %v489, %v496
  %v498 = vlaneseq
  %v499 = vshrl.u32 %v498, 7
  %v500 = vsub.s32 1, %v499
  %v501 = vrot.slane %v489, %v500
  %v502 = vlaneseq
  %v503 = vshrl.u32 %v502, 7
  %v504 = vsub.s32 0, %v503
  %v505 = vrot.slane %v490, %v504
  %v506 = vlaneseq
  %v507 = vshrl.u32 %v506, 7
  %v508 = vsub.s32 1, %v507
  %v509 = vrot.slane %v490, %v508
  %v514 = vmul.f32 %v497, %v492
  %v515 = vmul.f32 %v501, %v493
  %v516 = vmul.f32 %v505, %v492
  %v517 = vmul.f32 %v509, %v493
  %v518 = vadd.f32 %v476, %v514
  %v519 = vadd.f32 %v477, %v515
  %v520 = vadd.f32 %v478, %v516
  %v521 = vadd.f32 %v479, %v517
  %s522 = scalar_lea.vmem %s0, 48
  %v523 = vld [vmem:[%s522] sm:$0xf]
  %v526 = vunpack.c.l.s4 1966171168
  %v527 = vunpack.c.0.s8 %v526
  %v528 = vlaneseq
  %v529 = vshrl.u32 %v528, 7
  %v530 = vsub.s32 %v527, %v529
  %v531 = vrot.slane %v523, %v530
  %v532 = vcombine.high %v531, %v531
  %s533 = scalar_lea.vmem %s1, 192
  %v534 = vld [vmem:[%s533] sm:$0xff]
  %v535 = vld [vmem:[%s533 + $0x8] sm:$0xff]
  %v536 = vlaneseq
  %v537 = vshrl.u32 %v536, 7
  %v538 = vsub.s32 0, %v537
  %v539 = vrot.slane %v531, %v538
  %v540 = vlaneseq
  %v541 = vshrl.u32 %v540, 7
  %v542 = vsub.s32 1, %v541
  %v543 = vrot.slane %v531, %v542
  %v544 = vlaneseq
  %v545 = vshrl.u32 %v544, 7
  %v546 = vsub.s32 0, %v545
  %v547 = vrot.slane %v532, %v546
  %v548 = vlaneseq
  %v549 = vshrl.u32 %v548, 7
  %v550 = vsub.s32 1, %v549
  %v551 = vrot.slane %v532, %v550
  %v556 = vmul.f32 %v539, %v534
  %v557 = vmul.f32 %v543, %v535
  %v558 = vmul.f32 %v547, %v534
  %v559 = vmul.f32 %v551, %v535
  %v560 = vadd.f32 %v518, %v556
  %v561 = vadd.f32 %v519, %v557
  %v562 = vadd.f32 %v520, %v558
  %v563 = vadd.f32 %v521, %v559
  %s564 = scalar_lea.vmem %s0, 52
  %v565 = vld [vmem:[%s564] sm:$0xf]
  %v568 = vunpack.c.l.s4 1966171168
  %v569 = vunpack.c.0.s8 %v568
  %v570 = vlaneseq
  %v571 = vshrl.u32 %v570, 7
  %v572 = vsub.s32 %v569, %v571
  %v573 = vrot.slane %v565, %v572
  %v574 = vcombine.high %v573, %v573
  %s575 = scalar_lea.vmem %s1, 208
  %v576 = vld [vmem:[%s575] sm:$0xff]
  %v577 = vld [vmem:[%s575 + $0x8] sm:$0xff]
  %v578 = vlaneseq
  %v579 = vshrl.u32 %v578, 7
  %v580 = vsub.s32 0, %v579
  %v581 = vrot.slane %v573, %v580
  %v582 = vlaneseq
  %v583 = vshrl.u32 %v582, 7
  %v584 = vsub.s32 1, %v583
  %v585 = vrot.slane %v573, %v584
  %v586 = vlaneseq
  %v587 = vshrl.u32 %v586, 7
  %v588 = vsub.s32 0, %v587
  %v589 = vrot.slane %v574, %v588
  %v590 = vlaneseq
  %v591 = vshrl.u32 %v590, 7
  %v592 = vsub.s32 1, %v591
  %v593 = vrot.slane %v574, %v592
  %v598 = vmul.f32 %v581, %v576
  %v599 = vmul.f32 %v585, %v577
  %v600 = vmul.f32 %v589, %v576
  %v601 = vmul.f32 %v593, %v577
  %v602 = vadd.f32 %v560, %v598
  %v603 = vadd.f32 %v561, %v599
  %v604 = vadd.f32 %v562, %v600
  %v605 = vadd.f32 %v563, %v601
  %s606 = scalar_lea.vmem %s0, 56
  %v607 = vld [vmem:[%s606] sm:$0xf]
  %v610 = vunpack.c.l.s4 1966171168
  %v611 = vunpack.c.0.s8 %v610
  %v612 = vlaneseq
  %v613 = vshrl.u32 %v612, 7
  %v614 = vsub.s32 %v611, %v613
  %v615 = vrot.slane %v607, %v614
  %v616 = vcombine.high %v615, %v615
  %s617 = scalar_lea.vmem %s1, 224
  %v618 = vld [vmem:[%s617] sm:$0xff]
  %v619 = vld [vmem:[%s617 + $0x8] sm:$0xff]
  %v620 = vlaneseq
  %v621 = vshrl.u32 %v620, 7
  %v622 = vsub.s32 0, %v621
  %v623 = vrot.slane %v615, %v622
  %v624 = vlaneseq
  %v625 = vshrl.u32 %v624, 7
  %v626 = vsub.s32 1, %v625
  %v627 = vrot.slane %v615, %v626
  %v628 = vlaneseq
  %v629 = vshrl.u32 %v628, 7
  %v630 = vsub.s32 0, %v629
  %v631 = vrot.slane %v616, %v630
  %v632 = vlaneseq
  %v633 = vshrl.u32 %v632, 7
  %v634 = vsub.s32 1, %v633
  %v635 = vrot.slane %v616, %v634
  %v640 = vmul.f32 %v623, %v618
  %v641 = vmul.f32 %v627, %v619
  %v642 = vmul.f32 %v631, %v618
  %v643 = vmul.f32 %v635, %v619
  %v644 = vadd.f32 %v602, %v640
  %v645 = vadd.f32 %v603, %v641
  %v646 = vadd.f32 %v604, %v642
  %v647 = vadd.f32 %v605, %v643
  %s648 = scalar_lea.vmem %s0, 60
  %v649 = vld [vmem:[%s648] sm:$0xf]
  %v652 = vunpack.c.l.s4 1966171168
  %v653 = vunpack.c.0.s8 %v652
  %v654 = vlaneseq
  %v655 = vshrl.u32 %v654, 7
  %v656 = vsub.s32 %v653, %v655
  %v657 = vrot.slane %v649, %v656
  %v658 = vcombine.high %v657, %v657
  %s659 = scalar_lea.vmem %s1, 240
  %v660 = vld [vmem:[%s659] sm:$0xff]
  %v661 = vld [vmem:[%s659 + $0x8] sm:$0xff]
  %v662 = vlaneseq
  %v663 = vshrl.u32 %v662, 7
  %v664 = vsub.s32 0, %v663
  %v665 = vrot.slane %v657, %v664
  %v666 = vlaneseq
  %v667 = vshrl.u32 %v666, 7
  %v668 = vsub.s32 1, %v667
  %v669 = vrot.slane %v657, %v668
  %v670 = vlaneseq
  %v671 = vshrl.u32 %v670, 7
  %v672 = vsub.s32 0, %v671
  %v673 = vrot.slane %v658, %v672
  %v674 = vlaneseq
  %v675 = vshrl.u32 %v674, 7
  %v676 = vsub.s32 1, %v675
  %v677 = vrot.slane %v658, %v676
  %v682 = vmul.f32 %v665, %v660
  %v683 = vmul.f32 %v669, %v661
  %v684 = vmul.f32 %v673, %v660
  %v685 = vmul.f32 %v677, %v661
  %v686 = vadd.f32 %v644, %v682
  %v687 = vadd.f32 %v645, %v683
  %v688 = vadd.f32 %v646, %v684
  %v689 = vadd.f32 %v647, %v685
  %s690 = scalar_lea.vmem %s0, 64
  %v691 = vld [vmem:[%s690] sm:$0xf]
  %v694 = vunpack.c.l.s4 1966171168
  %v695 = vunpack.c.0.s8 %v694
  %v696 = vlaneseq
  %v697 = vshrl.u32 %v696, 7
  %v698 = vsub.s32 %v695, %v697
  %v699 = vrot.slane %v691, %v698
  %v700 = vcombine.high %v699, %v699
  %s701 = scalar_lea.vmem %s1, 256
  %v702 = vld [vmem:[%s701] sm:$0xff]
  %v703 = vld [vmem:[%s701 + $0x8] sm:$0xff]
  %v704 = vlaneseq
  %v705 = vshrl.u32 %v704, 7
  %v706 = vsub.s32 0, %v705
  %v707 = vrot.slane %v699, %v706
  %v708 = vlaneseq
  %v709 = vshrl.u32 %v708, 7
  %v710 = vsub.s32 1, %v709
  %v711 = vrot.slane %v699, %v710
  %v712 = vlaneseq
  %v713 = vshrl.u32 %v712, 7
  %v714 = vsub.s32 0, %v713
  %v715 = vrot.slane %v700, %v714
  %v716 = vlaneseq
  %v717 = vshrl.u32 %v716, 7
  %v718 = vsub.s32 1, %v717
  %v719 = vrot.slane %v700, %v718
  %v724 = vmul.f32 %v707, %v702
  %v725 = vmul.f32 %v711, %v703
  %v726 = vmul.f32 %v715, %v702
  %v727 = vmul.f32 %v719, %v703
  %v728 = vadd.f32 %v686, %v724
  %v729 = vadd.f32 %v687, %v725
  %v730 = vadd.f32 %v688, %v726
  %v731 = vadd.f32 %v689, %v727
  %s732 = scalar_lea.vmem %s0, 68
  %v733 = vld [vmem:[%s732] sm:$0xf]
  %v736 = vunpack.c.l.s4 1966171168
  %v737 = vunpack.c.0.s8 %v736
  %v738 = vlaneseq
  %v739 = vshrl.u32 %v738, 7
  %v740 = vsub.s32 %v737, %v739
  %v741 = vrot.slane %v733, %v740
  %v742 = vcombine.high %v741, %v741
  %s743 = scalar_lea.vmem %s1, 272
  %v744 = vld [vmem:[%s743] sm:$0xff]
  %v745 = vld [vmem:[%s743 + $0x8] sm:$0xff]
  %v746 = vlaneseq
  %v747 = vshrl.u32 %v746, 7
  %v748 = vsub.s32 0, %v747
  %v749 = vrot.slane %v741, %v748
  %v750 = vlaneseq
  %v751 = vshrl.u32 %v750, 7
  %v752 = vsub.s32 1, %v751
  %v753 = vrot.slane %v741, %v752
  %v754 = vlaneseq
  %v755 = vshrl.u32 %v754, 7
  %v756 = vsub.s32 0, %v755
  %v757 = vrot.slane %v742, %v756
  %v758 = vlaneseq
  %v759 = vshrl.u32 %v758, 7
  %v760 = vsub.s32 1, %v759
  %v761 = vrot.slane %v742, %v760
  %v766 = vmul.f32 %v749, %v744
  %v767 = vmul.f32 %v753, %v745
  %v768 = vmul.f32 %v757, %v744
  %v769 = vmul.f32 %v761, %v745
  %v770 = vadd.f32 %v728, %v766
  %v771 = vadd.f32 %v729, %v767
  %v772 = vadd.f32 %v730, %v768
  %v773 = vadd.f32 %v731, %v769
  %s774 = scalar_lea.vmem %s0, 72
  %v775 = vld [vmem:[%s774] sm:$0xf]
  %v778 = vunpack.c.l.s4 1966171168
  %v779 = vunpack.c.0.s8 %v778
  %v780 = vlaneseq
  %v781 = vshrl.u32 %v780, 7
  %v782 = vsub.s32 %v779, %v781
  %v783 = vrot.slane %v775, %v782
  %v784 = vcombine.high %v783, %v783
  %s785 = scalar_lea.vmem %s1, 288
  %v786 = vld [vmem:[%s785] sm:$0xff]
  %v787 = vld [vmem:[%s785 + $0x8] sm:$0xff]
  %v788 = vlaneseq
  %v789 = vshrl.u32 %v788, 7
  %v790 = vsub.s32 0, %v789
  %v791 = vrot.slane %v783, %v790
  %v792 = vlaneseq
  %v793 = vshrl.u32 %v792, 7
  %v794 = vsub.s32 1, %v793
  %v795 = vrot.slane %v783, %v794
  %v796 = vlaneseq
  %v797 = vshrl.u32 %v796, 7
  %v798 = vsub.s32 0, %v797
  %v799 = vrot.slane %v784, %v798
  %v800 = vlaneseq
  %v801 = vshrl.u32 %v800, 7
  %v802 = vsub.s32 1, %v801
  %v803 = vrot.slane %v784, %v802
  %v808 = vmul.f32 %v791, %v786
  %v809 = vmul.f32 %v795, %v787
  %v810 = vmul.f32 %v799, %v786
  %v811 = vmul.f32 %v803, %v787
  %v812 = vadd.f32 %v770, %v808
  %v813 = vadd.f32 %v771, %v809
  %v814 = vadd.f32 %v772, %v810
  %v815 = vadd.f32 %v773, %v811
  %s816 = scalar_lea.vmem %s0, 76
  %v817 = vld [vmem:[%s816] sm:$0xf]
  %v820 = vunpack.c.l.s4 1966171168
  %v821 = vunpack.c.0.s8 %v820
  %v822 = vlaneseq
  %v823 = vshrl.u32 %v822, 7
  %v824 = vsub.s32 %v821, %v823
  %v825 = vrot.slane %v817, %v824
  %v826 = vcombine.high %v825, %v825
  %s827 = scalar_lea.vmem %s1, 304
  %v828 = vld [vmem:[%s827] sm:$0xff]
  %v829 = vld [vmem:[%s827 + $0x8] sm:$0xff]
  %v830 = vlaneseq
  %v831 = vshrl.u32 %v830, 7
  %v832 = vsub.s32 0, %v831
  %v833 = vrot.slane %v825, %v832
  %v834 = vlaneseq
  %v835 = vshrl.u32 %v834, 7
  %v836 = vsub.s32 1, %v835
  %v837 = vrot.slane %v825, %v836
  %v838 = vlaneseq
  %v839 = vshrl.u32 %v838, 7
  %v840 = vsub.s32 0, %v839
  %v841 = vrot.slane %v826, %v840
  %v842 = vlaneseq
  %v843 = vshrl.u32 %v842, 7
  %v844 = vsub.s32 1, %v843
  %v845 = vrot.slane %v826, %v844
  %v850 = vmul.f32 %v833, %v828
  %v851 = vmul.f32 %v837, %v829
  %v852 = vmul.f32 %v841, %v828
  %v853 = vmul.f32 %v845, %v829
  %v854 = vadd.f32 %v812, %v850
  %v855 = vadd.f32 %v813, %v851
  %v856 = vadd.f32 %v814, %v852
  %v857 = vadd.f32 %v815, %v853
  %s858 = scalar_lea.vmem %s0, 80
  %v859 = vld [vmem:[%s858] sm:$0xf]
  %v862 = vunpack.c.l.s4 1966171168
  %v863 = vunpack.c.0.s8 %v862
  %v864 = vlaneseq
  %v865 = vshrl.u32 %v864, 7
  %v866 = vsub.s32 %v863, %v865
  %v867 = vrot.slane %v859, %v866
  %v868 = vcombine.high %v867, %v867
  %s869 = scalar_lea.vmem %s1, 320
  %v870 = vld [vmem:[%s869] sm:$0xff]
  %v871 = vld [vmem:[%s869 + $0x8] sm:$0xff]
  %v872 = vlaneseq
  %v873 = vshrl.u32 %v872, 7
  %v874 = vsub.s32 0, %v873
  %v875 = vrot.slane %v867, %v874
  %v876 = vlaneseq
  %v877 = vshrl.u32 %v876, 7
  %v878 = vsub.s32 1, %v877
  %v879 = vrot.slane %v867, %v878
  %v880 = vlaneseq
  %v881 = vshrl.u32 %v880, 7
  %v882 = vsub.s32 0, %v881
  %v883 = vrot.slane %v868, %v882
  %v884 = vlaneseq
  %v885 = vshrl.u32 %v884, 7
  %v886 = vsub.s32 1, %v885
  %v887 = vrot.slane %v868, %v886
  %v892 = vmul.f32 %v875, %v870
  %v893 = vmul.f32 %v879, %v871
  %v894 = vmul.f32 %v883, %v870
  %v895 = vmul.f32 %v887, %v871
  %v896 = vadd.f32 %v854, %v892
  %v897 = vadd.f32 %v855, %v893
  %v898 = vadd.f32 %v856, %v894
  %v899 = vadd.f32 %v857, %v895
  %s900 = scalar_lea.vmem %s0, 84
  %v901 = vld [vmem:[%s900] sm:$0xf]
  %v904 = vunpack.c.l.s4 1966171168
  %v905 = vunpack.c.0.s8 %v904
  %v906 = vlaneseq
  %v907 = vshrl.u32 %v906, 7
  %v908 = vsub.s32 %v905, %v907
  %v909 = vrot.slane %v901, %v908
  %v910 = vcombine.high %v909, %v909
  %s911 = scalar_lea.vmem %s1, 336
  %v912 = vld [vmem:[%s911] sm:$0xff]
  %v913 = vld [vmem:[%s911 + $0x8] sm:$0xff]
  %v914 = vlaneseq
  %v915 = vshrl.u32 %v914, 7
  %v916 = vsub.s32 0, %v915
  %v917 = vrot.slane %v909, %v916
  %v918 = vlaneseq
  %v919 = vshrl.u32 %v918, 7
  %v920 = vsub.s32 1, %v919
  %v921 = vrot.slane %v909, %v920
  %v922 = vlaneseq
  %v923 = vshrl.u32 %v922, 7
  %v924 = vsub.s32 0, %v923
  %v925 = vrot.slane %v910, %v924
  %v926 = vlaneseq
  %v927 = vshrl.u32 %v926, 7
  %v928 = vsub.s32 1, %v927
  %v929 = vrot.slane %v910, %v928
  %v934 = vmul.f32 %v917, %v912
  %v935 = vmul.f32 %v921, %v913
  %v936 = vmul.f32 %v925, %v912
  %v937 = vmul.f32 %v929, %v913
  %v938 = vadd.f32 %v896, %v934
  %v939 = vadd.f32 %v897, %v935
  %v940 = vadd.f32 %v898, %v936
  %v941 = vadd.f32 %v899, %v937
  %s942 = scalar_lea.vmem %s0, 88
  %v943 = vld [vmem:[%s942] sm:$0xf]
  %v946 = vunpack.c.l.s4 1966171168
  %v947 = vunpack.c.0.s8 %v946
  %v948 = vlaneseq
  %v949 = vshrl.u32 %v948, 7
  %v950 = vsub.s32 %v947, %v949
  %v951 = vrot.slane %v943, %v950
  %v952 = vcombine.high %v951, %v951
  %s953 = scalar_lea.vmem %s1, 352
  %v954 = vld [vmem:[%s953] sm:$0xff]
  %v955 = vld [vmem:[%s953 + $0x8] sm:$0xff]
  %v956 = vlaneseq
  %v957 = vshrl.u32 %v956, 7
  %v958 = vsub.s32 0, %v957
  %v959 = vrot.slane %v951, %v958
  %v960 = vlaneseq
  %v961 = vshrl.u32 %v960, 7
  %v962 = vsub.s32 1, %v961
  %v963 = vrot.slane %v951, %v962
  %v964 = vlaneseq
  %v965 = vshrl.u32 %v964, 7
  %v966 = vsub.s32 0, %v965
  %v967 = vrot.slane %v952, %v966
  %v968 = vlaneseq
  %v969 = vshrl.u32 %v968, 7
  %v970 = vsub.s32 1, %v969
  %v971 = vrot.slane %v952, %v970
  %v976 = vmul.f32 %v959, %v954
  %v977 = vmul.f32 %v963, %v955
  %v978 = vmul.f32 %v967, %v954
  %v979 = vmul.f32 %v971, %v955
  %v980 = vadd.f32 %v938, %v976
  %v981 = vadd.f32 %v939, %v977
  %v982 = vadd.f32 %v940, %v978
  %v983 = vadd.f32 %v941, %v979
  %s984 = scalar_lea.vmem %s0, 92
  %v985 = vld [vmem:[%s984] sm:$0xf]
  %v988 = vunpack.c.l.s4 1966171168
  %v989 = vunpack.c.0.s8 %v988
  %v990 = vlaneseq
  %v991 = vshrl.u32 %v990, 7
  %v992 = vsub.s32 %v989, %v991
  %v993 = vrot.slane %v985, %v992
  %v994 = vcombine.high %v993, %v993
  %s995 = scalar_lea.vmem %s1, 368
  %v996 = vld [vmem:[%s995] sm:$0xff]
  %v997 = vld [vmem:[%s995 + $0x8] sm:$0xff]
  %v998 = vlaneseq
  %v999 = vshrl.u32 %v998, 7
  %v1000 = vsub.s32 0, %v999
  %v1001 = vrot.slane %v993, %v1000
  %v1002 = vlaneseq
  %v1003 = vshrl.u32 %v1002, 7
  %v1004 = vsub.s32 1, %v1003
  %v1005 = vrot.slane %v993, %v1004
  %v1006 = vlaneseq
  %v1007 = vshrl.u32 %v1006, 7
  %v1008 = vsub.s32 0, %v1007
  %v1009 = vrot.slane %v994, %v1008
  %v1010 = vlaneseq
  %v1011 = vshrl.u32 %v1010, 7
  %v1012 = vsub.s32 1, %v1011
  %v1013 = vrot.slane %v994, %v1012
  %v1018 = vmul.f32 %v1001, %v996
  %v1019 = vmul.f32 %v1005, %v997
  %v1020 = vmul.f32 %v1009, %v996
  %v1021 = vmul.f32 %v1013, %v997
  %v1022 = vadd.f32 %v980, %v1018
  %v1023 = vadd.f32 %v981, %v1019
  %v1024 = vadd.f32 %v982, %v1020
  %v1025 = vadd.f32 %v983, %v1021
  %s1026 = scalar_lea.vmem %s0, 96
  %v1027 = vld [vmem:[%s1026] sm:$0xf]
  %v1030 = vunpack.c.l.s4 1966171168
  %v1031 = vunpack.c.0.s8 %v1030
  %v1032 = vlaneseq
  %v1033 = vshrl.u32 %v1032, 7
  %v1034 = vsub.s32 %v1031, %v1033
  %v1035 = vrot.slane %v1027, %v1034
  %v1036 = vcombine.high %v1035, %v1035
  %s1037 = scalar_lea.vmem %s1, 384
  %v1038 = vld [vmem:[%s1037] sm:$0xff]
  %v1039 = vld [vmem:[%s1037 + $0x8] sm:$0xff]
  %v1040 = vlaneseq
  %v1041 = vshrl.u32 %v1040, 7
  %v1042 = vsub.s32 0, %v1041
  %v1043 = vrot.slane %v1035, %v1042
  %v1044 = vlaneseq
  %v1045 = vshrl.u32 %v1044, 7
  %v1046 = vsub.s32 1, %v1045
  %v1047 = vrot.slane %v1035, %v1046
  %v1048 = vlaneseq
  %v1049 = vshrl.u32 %v1048, 7
  %v1050 = vsub.s32 0, %v1049
  %v1051 = vrot.slane %v1036, %v1050
  %v1052 = vlaneseq
  %v1053 = vshrl.u32 %v1052, 7
  %v1054 = vsub.s32 1, %v1053
  %v1055 = vrot.slane %v1036, %v1054
  %v1060 = vmul.f32 %v1043, %v1038
  %v1061 = vmul.f32 %v1047, %v1039
  %v1062 = vmul.f32 %v1051, %v1038
  %v1063 = vmul.f32 %v1055, %v1039
  %v1064 = vadd.f32 %v1022, %v1060
  %v1065 = vadd.f32 %v1023, %v1061
  %v1066 = vadd.f32 %v1024, %v1062
  %v1067 = vadd.f32 %v1025, %v1063
  %s1068 = scalar_lea.vmem %s0, 100
  %v1069 = vld [vmem:[%s1068] sm:$0xf]
  %v1072 = vunpack.c.l.s4 1966171168
  %v1073 = vunpack.c.0.s8 %v1072
  %v1074 = vlaneseq
  %v1075 = vshrl.u32 %v1074, 7
  %v1076 = vsub.s32 %v1073, %v1075
  %v1077 = vrot.slane %v1069, %v1076
  %v1078 = vcombine.high %v1077, %v1077
  %s1079 = scalar_lea.vmem %s1, 400
  %v1080 = vld [vmem:[%s1079] sm:$0xff]
  %v1081 = vld [vmem:[%s1079 + $0x8] sm:$0xff]
  %v1082 = vlaneseq
  %v1083 = vshrl.u32 %v1082, 7
  %v1084 = vsub.s32 0, %v1083
  %v1085 = vrot.slane %v1077, %v1084
  %v1086 = vlaneseq
  %v1087 = vshrl.u32 %v1086, 7
  %v1088 = vsub.s32 1, %v1087
  %v1089 = vrot.slane %v1077, %v1088
  %v1090 = vlaneseq
  %v1091 = vshrl.u32 %v1090, 7
  %v1092 = vsub.s32 0, %v1091
  %v1093 = vrot.slane %v1078, %v1092
  %v1094 = vlaneseq
  %v1095 = vshrl.u32 %v1094, 7
  %v1096 = vsub.s32 1, %v1095
  %v1097 = vrot.slane %v1078, %v1096
  %v1102 = vmul.f32 %v1085, %v1080
  %v1103 = vmul.f32 %v1089, %v1081
  %v1104 = vmul.f32 %v1093, %v1080
  %v1105 = vmul.f32 %v1097, %v1081
  %v1106 = vadd.f32 %v1064, %v1102
  %v1107 = vadd.f32 %v1065, %v1103
  %v1108 = vadd.f32 %v1066, %v1104
  %v1109 = vadd.f32 %v1067, %v1105
  %s1110 = scalar_lea.vmem %s0, 104
  %v1111 = vld [vmem:[%s1110] sm:$0xf]
  %v1114 = vunpack.c.l.s4 1966171168
  %v1115 = vunpack.c.0.s8 %v1114
  %v1116 = vlaneseq
  %v1117 = vshrl.u32 %v1116, 7
  %v1118 = vsub.s32 %v1115, %v1117
  %v1119 = vrot.slane %v1111, %v1118
  %v1120 = vcombine.high %v1119, %v1119
  %s1121 = scalar_lea.vmem %s1, 416
  %v1122 = vld [vmem:[%s1121] sm:$0xff]
  %v1123 = vld [vmem:[%s1121 + $0x8] sm:$0xff]
  %v1124 = vlaneseq
  %v1125 = vshrl.u32 %v1124, 7
  %v1126 = vsub.s32 0, %v1125
  %v1127 = vrot.slane %v1119, %v1126
  %v1128 = vlaneseq
  %v1129 = vshrl.u32 %v1128, 7
  %v1130 = vsub.s32 1, %v1129
  %v1131 = vrot.slane %v1119, %v1130
  %v1132 = vlaneseq
  %v1133 = vshrl.u32 %v1132, 7
  %v1134 = vsub.s32 0, %v1133
  %v1135 = vrot.slane %v1120, %v1134
  %v1136 = vlaneseq
  %v1137 = vshrl.u32 %v1136, 7
  %v1138 = vsub.s32 1, %v1137
  %v1139 = vrot.slane %v1120, %v1138
  %v1144 = vmul.f32 %v1127, %v1122
  %v1145 = vmul.f32 %v1131, %v1123
  %v1146 = vmul.f32 %v1135, %v1122
  %v1147 = vmul.f32 %v1139, %v1123
  %v1148 = vadd.f32 %v1106, %v1144
  %v1149 = vadd.f32 %v1107, %v1145
  %v1150 = vadd.f32 %v1108, %v1146
  %v1151 = vadd.f32 %v1109, %v1147
  %s1152 = scalar_lea.vmem %s0, 108
  %v1153 = vld [vmem:[%s1152] sm:$0xf]
  %v1156 = vunpack.c.l.s4 1966171168
  %v1157 = vunpack.c.0.s8 %v1156
  %v1158 = vlaneseq
  %v1159 = vshrl.u32 %v1158, 7
  %v1160 = vsub.s32 %v1157, %v1159
  %v1161 = vrot.slane %v1153, %v1160
  %v1162 = vcombine.high %v1161, %v1161
  %s1163 = scalar_lea.vmem %s1, 432
  %v1164 = vld [vmem:[%s1163] sm:$0xff]
  %v1165 = vld [vmem:[%s1163 + $0x8] sm:$0xff]
  %v1166 = vlaneseq
  %v1167 = vshrl.u32 %v1166, 7
  %v1168 = vsub.s32 0, %v1167
  %v1169 = vrot.slane %v1161, %v1168
  %v1170 = vlaneseq
  %v1171 = vshrl.u32 %v1170, 7
  %v1172 = vsub.s32 1, %v1171
  %v1173 = vrot.slane %v1161, %v1172
  %v1174 = vlaneseq
  %v1175 = vshrl.u32 %v1174, 7
  %v1176 = vsub.s32 0, %v1175
  %v1177 = vrot.slane %v1162, %v1176
  %v1178 = vlaneseq
  %v1179 = vshrl.u32 %v1178, 7
  %v1180 = vsub.s32 1, %v1179
  %v1181 = vrot.slane %v1162, %v1180
  %v1186 = vmul.f32 %v1169, %v1164
  %v1187 = vmul.f32 %v1173, %v1165
  %v1188 = vmul.f32 %v1177, %v1164
  %v1189 = vmul.f32 %v1181, %v1165
  %v1190 = vadd.f32 %v1148, %v1186
  %v1191 = vadd.f32 %v1149, %v1187
  %v1192 = vadd.f32 %v1150, %v1188
  %v1193 = vadd.f32 %v1151, %v1189
  %s1194 = scalar_lea.vmem %s0, 112
  %v1195 = vld [vmem:[%s1194] sm:$0xf]
  %v1198 = vunpack.c.l.s4 1966171168
  %v1199 = vunpack.c.0.s8 %v1198
  %v1200 = vlaneseq
  %v1201 = vshrl.u32 %v1200, 7
  %v1202 = vsub.s32 %v1199, %v1201
  %v1203 = vrot.slane %v1195, %v1202
  %v1204 = vcombine.high %v1203, %v1203
  %s1205 = scalar_lea.vmem %s1, 448
  %v1206 = vld [vmem:[%s1205] sm:$0xff]
  %v1207 = vld [vmem:[%s1205 + $0x8] sm:$0xff]
  %v1208 = vlaneseq
  %v1209 = vshrl.u32 %v1208, 7
  %v1210 = vsub.s32 0, %v1209
  %v1211 = vrot.slane %v1203, %v1210
  %v1212 = vlaneseq
  %v1213 = vshrl.u32 %v1212, 7
  %v1214 = vsub.s32 1, %v1213
  %v1215 = vrot.slane %v1203, %v1214
  %v1216 = vlaneseq
  %v1217 = vshrl.u32 %v1216, 7
  %v1218 = vsub.s32 0, %v1217
  %v1219 = vrot.slane %v1204, %v1218
  %v1220 = vlaneseq
  %v1221 = vshrl.u32 %v1220, 7
  %v1222 = vsub.s32 1, %v1221
  %v1223 = vrot.slane %v1204, %v1222
  %v1228 = vmul.f32 %v1211, %v1206
  %v1229 = vmul.f32 %v1215, %v1207
  %v1230 = vmul.f32 %v1219, %v1206
  %v1231 = vmul.f32 %v1223, %v1207
  %v1232 = vadd.f32 %v1190, %v1228
  %v1233 = vadd.f32 %v1191, %v1229
  %v1234 = vadd.f32 %v1192, %v1230
  %v1235 = vadd.f32 %v1193, %v1231
  %s1236 = scalar_lea.vmem %s0, 116
  %v1237 = vld [vmem:[%s1236] sm:$0xf]
  %v1240 = vunpack.c.l.s4 1966171168
  %v1241 = vunpack.c.0.s8 %v1240
  %v1242 = vlaneseq
  %v1243 = vshrl.u32 %v1242, 7
  %v1244 = vsub.s32 %v1241, %v1243
  %v1245 = vrot.slane %v1237, %v1244
  %v1246 = vcombine.high %v1245, %v1245
  %s1247 = scalar_lea.vmem %s1, 464
  %v1248 = vld [vmem:[%s1247] sm:$0xff]
  %v1249 = vld [vmem:[%s1247 + $0x8] sm:$0xff]
  %v1250 = vlaneseq
  %v1251 = vshrl.u32 %v1250, 7
  %v1252 = vsub.s32 0, %v1251
  %v1253 = vrot.slane %v1245, %v1252
  %v1254 = vlaneseq
  %v1255 = vshrl.u32 %v1254, 7
  %v1256 = vsub.s32 1, %v1255
  %v1257 = vrot.slane %v1245, %v1256
  %v1258 = vlaneseq
  %v1259 = vshrl.u32 %v1258, 7
  %v1260 = vsub.s32 0, %v1259
  %v1261 = vrot.slane %v1246, %v1260
  %v1262 = vlaneseq
  %v1263 = vshrl.u32 %v1262, 7
  %v1264 = vsub.s32 1, %v1263
  %v1265 = vrot.slane %v1246, %v1264
  %v1270 = vmul.f32 %v1253, %v1248
  %v1271 = vmul.f32 %v1257, %v1249
  %v1272 = vmul.f32 %v1261, %v1248
  %v1273 = vmul.f32 %v1265, %v1249
  %v1274 = vadd.f32 %v1232, %v1270
  %v1275 = vadd.f32 %v1233, %v1271
  %v1276 = vadd.f32 %v1234, %v1272
  %v1277 = vadd.f32 %v1235, %v1273
  %s1278 = scalar_lea.vmem %s0, 120
  %v1279 = vld [vmem:[%s1278] sm:$0xf]
  %v1282 = vunpack.c.l.s4 1966171168
  %v1283 = vunpack.c.0.s8 %v1282
  %v1284 = vlaneseq
  %v1285 = vshrl.u32 %v1284, 7
  %v1286 = vsub.s32 %v1283, %v1285
  %v1287 = vrot.slane %v1279, %v1286
  %v1288 = vcombine.high %v1287, %v1287
  %s1289 = scalar_lea.vmem %s1, 480
  %v1290 = vld [vmem:[%s1289] sm:$0xff]
  %v1291 = vld [vmem:[%s1289 + $0x8] sm:$0xff]
  %v1292 = vlaneseq
  %v1293 = vshrl.u32 %v1292, 7
  %v1294 = vsub.s32 0, %v1293
  %v1295 = vrot.slane %v1287, %v1294
  %v1296 = vlaneseq
  %v1297 = vshrl.u32 %v1296, 7
  %v1298 = vsub.s32 1, %v1297
  %v1299 = vrot.slane %v1287, %v1298
  %v1300 = vlaneseq
  %v1301 = vshrl.u32 %v1300, 7
  %v1302 = vsub.s32 0, %v1301
  %v1303 = vrot.slane %v1288, %v1302
  %v1304 = vlaneseq
  %v1305 = vshrl.u32 %v1304, 7
  %v1306 = vsub.s32 1, %v1305
  %v1307 = vrot.slane %v1288, %v1306
  %v1312 = vmul.f32 %v1295, %v1290
  %v1313 = vmul.f32 %v1299, %v1291
  %v1314 = vmul.f32 %v1303, %v1290
  %v1315 = vmul.f32 %v1307, %v1291
  %v1316 = vadd.f32 %v1274, %v1312
  %v1317 = vadd.f32 %v1275, %v1313
  %v1318 = vadd.f32 %v1276, %v1314
  %v1319 = vadd.f32 %v1277, %v1315
  %s1320 = scalar_lea.vmem %s0, 124
  %v1321 = vld [vmem:[%s1320] sm:$0xf]
  %v1324 = vunpack.c.l.s4 1966171168
  %v1325 = vunpack.c.0.s8 %v1324
  %v1326 = vlaneseq
  %v1327 = vshrl.u32 %v1326, 7
  %v1328 = vsub.s32 %v1325, %v1327
  %v1329 = vrot.slane %v1321, %v1328
  %v1330 = vcombine.high %v1329, %v1329
  %s1331 = scalar_lea.vmem %s1, 496
  %v1332 = vld [vmem:[%s1331] sm:$0xff]
  %v1333 = vld [vmem:[%s1331 + $0x8] sm:$0xff]
  %v1334 = vlaneseq
  %v1335 = vshrl.u32 %v1334, 7
  %v1336 = vsub.s32 0, %v1335
  %v1337 = vrot.slane %v1329, %v1336
  %v1338 = vlaneseq
  %v1339 = vshrl.u32 %v1338, 7
  %v1340 = vsub.s32 1, %v1339
  %v1341 = vrot.slane %v1329, %v1340
  %v1342 = vlaneseq
  %v1343 = vshrl.u32 %v1342, 7
  %v1344 = vsub.s32 0, %v1343
  %v1345 = vrot.slane %v1330, %v1344
  %v1346 = vlaneseq
  %v1347 = vshrl.u32 %v1346, 7
  %v1348 = vsub.s32 1, %v1347
  %v1349 = vrot.slane %v1330, %v1348
  %v1354 = vmul.f32 %v1337, %v1332
  %v1355 = vmul.f32 %v1341, %v1333
  %v1356 = vmul.f32 %v1345, %v1332
  %v1357 = vmul.f32 %v1349, %v1333
  %v1358 = vadd.f32 %v1316, %v1354
  %v1359 = vadd.f32 %v1317, %v1355
  %v1360 = vadd.f32 %v1318, %v1356
  %v1361 = vadd.f32 %v1319, %v1357
  %s1362 = scalar_lea.vmem %s0, 128
  %v1363 = vld [vmem:[%s1362] sm:$0xf]
  %v1366 = vunpack.c.l.s4 1966171168
  %v1367 = vunpack.c.0.s8 %v1366
  %v1368 = vlaneseq
  %v1369 = vshrl.u32 %v1368, 7
  %v1370 = vsub.s32 %v1367, %v1369
  %v1371 = vrot.slane %v1363, %v1370
  %v1372 = vcombine.high %v1371, %v1371
  %s1373 = scalar_lea.vmem %s1, 512
  %v1374 = vld [vmem:[%s1373] sm:$0xff]
  %v1375 = vld [vmem:[%s1373 + $0x8] sm:$0xff]
  %v1376 = vlaneseq
  %v1377 = vshrl.u32 %v1376, 7
  %v1378 = vsub.s32 0, %v1377
  %v1379 = vrot.slane %v1371, %v1378
  %v1380 = vlaneseq
  %v1381 = vshrl.u32 %v1380, 7
  %v1382 = vsub.s32 1, %v1381
  %v1383 = vrot.slane %v1371, %v1382
  %v1384 = vlaneseq
  %v1385 = vshrl.u32 %v1384, 7
  %v1386 = vsub.s32 0, %v1385
  %v1387 = vrot.slane %v1372, %v1386
  %v1388 = vlaneseq
  %v1389 = vshrl.u32 %v1388, 7
  %v1390 = vsub.s32 1, %v1389
  %v1391 = vrot.slane %v1372, %v1390
  %v1396 = vmul.f32 %v1379, %v1374
  %v1397 = vmul.f32 %v1383, %v1375
  %v1398 = vmul.f32 %v1387, %v1374
  %v1399 = vmul.f32 %v1391, %v1375
  %v1400 = vadd.f32 %v1358, %v1396
  %v1401 = vadd.f32 %v1359, %v1397
  %v1402 = vadd.f32 %v1360, %v1398
  %v1403 = vadd.f32 %v1361, %v1399
  %s1404 = scalar_lea.vmem %s0, 132
  %v1405 = vld [vmem:[%s1404] sm:$0xf]
  %v1408 = vunpack.c.l.s4 1966171168
  %v1409 = vunpack.c.0.s8 %v1408
  %v1410 = vlaneseq
  %v1411 = vshrl.u32 %v1410, 7
  %v1412 = vsub.s32 %v1409, %v1411
  %v1413 = vrot.slane %v1405, %v1412
  %v1414 = vcombine.high %v1413, %v1413
  %s1415 = scalar_lea.vmem %s1, 528
  %v1416 = vld [vmem:[%s1415] sm:$0xff]
  %v1417 = vld [vmem:[%s1415 + $0x8] sm:$0xff]
  %v1418 = vlaneseq
  %v1419 = vshrl.u32 %v1418, 7
  %v1420 = vsub.s32 0, %v1419
  %v1421 = vrot.slane %v1413, %v1420
  %v1422 = vlaneseq
  %v1423 = vshrl.u32 %v1422, 7
  %v1424 = vsub.s32 1, %v1423
  %v1425 = vrot.slane %v1413, %v1424
  %v1426 = vlaneseq
  %v1427 = vshrl.u32 %v1426, 7
  %v1428 = vsub.s32 0, %v1427
  %v1429 = vrot.slane %v1414, %v1428
  %v1430 = vlaneseq
  %v1431 = vshrl.u32 %v1430, 7
  %v1432 = vsub.s32 1, %v1431
  %v1433 = vrot.slane %v1414, %v1432
  %v1438 = vmul.f32 %v1421, %v1416
  %v1439 = vmul.f32 %v1425, %v1417
  %v1440 = vmul.f32 %v1429, %v1416
  %v1441 = vmul.f32 %v1433, %v1417
  %v1442 = vadd.f32 %v1400, %v1438
  %v1443 = vadd.f32 %v1401, %v1439
  %v1444 = vadd.f32 %v1402, %v1440
  %v1445 = vadd.f32 %v1403, %v1441
  %s1446 = scalar_lea.vmem %s0, 136
  %v1447 = vld [vmem:[%s1446] sm:$0xf]
  %v1450 = vunpack.c.l.s4 1966171168
  %v1451 = vunpack.c.0.s8 %v1450
  %v1452 = vlaneseq
  %v1453 = vshrl.u32 %v1452, 7
  %v1454 = vsub.s32 %v1451, %v1453
  %v1455 = vrot.slane %v1447, %v1454
  %v1456 = vcombine.high %v1455, %v1455
  %s1457 = scalar_lea.vmem %s1, 544
  %v1458 = vld [vmem:[%s1457] sm:$0xff]
  %v1459 = vld [vmem:[%s1457 + $0x8] sm:$0xff]
  %v1460 = vlaneseq
  %v1461 = vshrl.u32 %v1460, 7
  %v1462 = vsub.s32 0, %v1461
  %v1463 = vrot.slane %v1455, %v1462
  %v1464 = vlaneseq
  %v1465 = vshrl.u32 %v1464, 7
  %v1466 = vsub.s32 1, %v1465
  %v1467 = vrot.slane %v1455, %v1466
  %v1468 = vlaneseq
  %v1469 = vshrl.u32 %v1468, 7
  %v1470 = vsub.s32 0, %v1469
  %v1471 = vrot.slane %v1456, %v1470
  %v1472 = vlaneseq
  %v1473 = vshrl.u32 %v1472, 7
  %v1474 = vsub.s32 1, %v1473
  %v1475 = vrot.slane %v1456, %v1474
  %v1480 = vmul.f32 %v1463, %v1458
  %v1481 = vmul.f32 %v1467, %v1459
  %v1482 = vmul.f32 %v1471, %v1458
  %v1483 = vmul.f32 %v1475, %v1459
  %v1484 = vadd.f32 %v1442, %v1480
  %v1485 = vadd.f32 %v1443, %v1481
  %v1486 = vadd.f32 %v1444, %v1482
  %v1487 = vadd.f32 %v1445, %v1483
  %s1488 = scalar_lea.vmem %s0, 140
  %v1489 = vld [vmem:[%s1488] sm:$0xf]
  %v1492 = vunpack.c.l.s4 1966171168
  %v1493 = vunpack.c.0.s8 %v1492
  %v1494 = vlaneseq
  %v1495 = vshrl.u32 %v1494, 7
  %v1496 = vsub.s32 %v1493, %v1495
  %v1497 = vrot.slane %v1489, %v1496
  %v1498 = vcombine.high %v1497, %v1497
  %s1499 = scalar_lea.vmem %s1, 560
  %v1500 = vld [vmem:[%s1499] sm:$0xff]
  %v1501 = vld [vmem:[%s1499 + $0x8] sm:$0xff]
  %v1502 = vlaneseq
  %v1503 = vshrl.u32 %v1502, 7
  %v1504 = vsub.s32 0, %v1503
  %v1505 = vrot.slane %v1497, %v1504
  %v1506 = vlaneseq
  %v1507 = vshrl.u32 %v1506, 7
  %v1508 = vsub.s32 1, %v1507
  %v1509 = vrot.slane %v1497, %v1508
  %v1510 = vlaneseq
  %v1511 = vshrl.u32 %v1510, 7
  %v1512 = vsub.s32 0, %v1511
  %v1513 = vrot.slane %v1498, %v1512
  %v1514 = vlaneseq
  %v1515 = vshrl.u32 %v1514, 7
  %v1516 = vsub.s32 1, %v1515
  %v1517 = vrot.slane %v1498, %v1516
  %v1522 = vmul.f32 %v1505, %v1500
  %v1523 = vmul.f32 %v1509, %v1501
  %v1524 = vmul.f32 %v1513, %v1500
  %v1525 = vmul.f32 %v1517, %v1501
  %v1526 = vadd.f32 %v1484, %v1522
  %v1527 = vadd.f32 %v1485, %v1523
  %v1528 = vadd.f32 %v1486, %v1524
  %v1529 = vadd.f32 %v1487, %v1525
  %v1530 = vld [vmem:[%s2] sm:$0xff]
  %v1531 = vld [vmem:[%s2 + $0x8] sm:$0xff]
  %v1532 = vadd.f32 %v1526, %v1530
  %v1533 = vadd.f32 %v1527, %v1531
  %v1534 = vadd.f32 %v1528, %v1530
  %v1535 = vadd.f32 %v1529, %v1531
  %v1536 = vadd.f32 %v1532, %v1533
  %1537 = vadd.xlane.f32.xlu0 %v1536
  %v1538 = vpop.xlane.xlu0 %1537
  %v1539 = vadd.f32 %v1534, %v1535
  %1540 = vadd.xlane.f32.xlu0 %v1539
  %v1541 = vpop.xlane.xlu0 %1540
  %v1542 = vadd.f32 %v1538, %v1541
  %v1543 = vmul.f32 %v1542, 0.001953125
  %v1544 = vsub.f32 %v1532, %v1543
  %v1545 = vsub.f32 %v1533, %v1543
  %v1546 = vsub.f32 %v1534, %v1543
  %v1547 = vsub.f32 %v1535, %v1543
  %v1548 = vmul.f32 %v1544, %v1544
  %v1549 = vmul.f32 %v1545, %v1545
  %v1550 = vmul.f32 %v1546, %v1546
  %v1551 = vmul.f32 %v1547, %v1547
  %v1552 = vadd.f32 %v1548, %v1549
  %1553 = vadd.xlane.f32.xlu0 %v1552
  %v1554 = vpop.xlane.xlu0 %1553
  %v1555 = vadd.f32 %v1550, %v1551
  %1556 = vadd.xlane.f32.xlu0 %v1555
  %v1557 = vpop.xlane.xlu0 %1556
  %v1558 = vadd.f32 %v1554, %v1557
  %v1559 = vmul.f32 %v1558, 0.001953125
  %v1560 = vld [vmem:[%s3] sm:$0xff]
  %v1561 = vadd.f32 %v1559, 1e-05
  %v1562 = vrsqrt.pop %v1561
  %v1563 = vmul.f32 %v1560, %v1562
  %1565 = vset.pattern.permute.xlu0 0
  %1566 = vperm.xlu0 %1565, %v1563
  %v1567 = vpop.permute.xlu0 %1566
  %v1569 = vmul.f32 %v1544, %v1567
  %v1570 = vmul.f32 %v1545, %v1567
  %v1571 = vmul.f32 %v1546, %v1567
  %v1572 = vmul.f32 %v1547, %v1567
  %v1573 = vld [vmem:[%s4] sm:$0xff]
  %1575 = vset.pattern.permute.xlu0 0
  %1576 = vperm.xlu0 %1575, %v1573
  %v1577 = vpop.permute.xlu0 %1576
  %v1579 = vadd.f32 %v1569, %v1577
  %v1580 = vadd.f32 %v1570, %v1577
  %v1581 = vadd.f32 %v1571, %v1577
  %v1582 = vadd.f32 %v1572, %v1577
  %v1583 = vmax.f32 %v1579, 0.0
  %v1584 = vmax.f32 %v1580, 0.0
  %v1585 = vmax.f32 %v1581, 0.0
  %v1586 = vmax.f32 %v1582, 0.0
  %1587 = vst [vmem:[%s5] sm:$0xff] %v1583
  %1588 = vst [vmem:[%s5 + $0x8] sm:$0xff] %v1584
  %1589 = vst [vmem:[%s5 + $0x10] sm:$0xff] %v1585
  %1590 = vst [vmem:[%s5 + $0x18] sm:$0xff] %v1586
  // Predicated region
  $region22: #{ll_custom_forward.1} parent=0 // pred_check
    _
  $region23: #{ll_custom_forward.1} parent=0 // pred_check_branch
    %1592 = sbr.rel (0) target = $region25
  $region24: #{ll_custom_forward.1} parent=0 // pred_region
    _
  $region25: #{ll_custom_forward.1} parent=0 // pred_fallthru
    _
  // Predicated region
  $region26: #{ll_custom_forward.1} parent=0 // pred_check
    _
  $region27: #{ll_custom_forward.1} parent=0 // pred_check_branch
    %1594 = sbr.rel (0) target = $region29
  $region28: #{ll_custom_forward.1} parent=0 // pred_region
    _
  $region29: #{ll_custom_forward.1} parent=0 // pred_fallthru
    _

</llo_original>
